<compile_context>
chip_gen: v7x
topology: tpu7x:2x2x1
jax: 0.10.0
libtpu: 0.0.40
codegen_flags: <defaults>
</compile_context>

<pallas_src>
import functools

import jax
import jax.numpy as jnp
import numpy as np
from jax import lax
from jax.experimental import pallas as pl
from jax.experimental.pallas import tpu as pltpu

LANE = 128
SUBLANE = 8


def _round_up(x, m):
    return (x + m - 1) // m * m


def _device_kind():
    try:
        return jax.devices()[0].device_kind.lower()
    except Exception:
        return ""


def _vmem_limit_bytes():
    kind = _device_kind()
    if "v5" in kind or "v6" in kind:
        return 96 * 1024 * 1024      # 128 MiB physical VMEM on v5e/v6e: go big
    return 48 * 1024 * 1024          # v7x has 64 MiB physical: leave headroom


def _use_bf16_epilogue():
    kind = _device_kind()
    return ("v6" in kind) or ("v7" in kind)   # v5e has no bf16 VPU -> keep f32


def _bytes_per_batch_row(t_in, t_out, vocab_pad, c_in, n_pad, max_k, out_pad):
    """Rough in-kernel VMEM bytes per batch row (intermediates BlockSpec can't
    see), used to cap the batch tile against the per-generation VMEM limit."""
    return (t_in * vocab_pad * 2             # one-hot (bf16)
            + 2 * t_in * c_in * 2            # gathered x (bf16) + slack
            + max_k * t_out * c_in * 2       # shifted-slice copies (bf16)
            + 2 * t_out * n_pad * 4          # conv accumulator + relu'd h (f32)
            + 2 * t_in * 4                   # token tile, double-buffered (int32)
            + 2 * out_pad * 4)               # output tile, double-buffered (f32)


def _pick_b_tile(batch, row_bytes, vmem_limit):
    budget = vmem_limit // 3                 # headroom: weights, compiler temps
    cands = [bt for bt in range(SUBLANE, batch + 1, SUBLANE)
             if batch % bt == 0 and bt * row_bytes <= budget]
    if not cands:
        return batch                         # tiny / odd batch: one full block
    multi = [bt for bt in cands if batch // bt >= 2]   # >=2 steps for v7x megacore
    return max(multi) if multi else max(cands)


def _textcnn_kernel(tok_ref, table_ref, w_ref, mbias_ref, dec_w_ref, dec_b_ref,
                    out_ref, *, bf16_epilogue):
    bt, t_in = tok_ref.shape
    vocab_pad, c_in = table_ref.shape
    max_k = w_ref.shape[0]
    t_out, n_pad = mbias_ref.shape

    # ---- in-kernel embedding gather: one-hot ids x bf16 table on the MXU ----
    tok = tok_ref[...]                                               # (bt, t_in) i32
    ids = lax.broadcasted_iota(jnp.int32, (bt, t_in, vocab_pad), 2)
    onehot = (ids == tok[:, :, None]).astype(table_ref.dtype)        # (bt, t_in, V)
    x = jnp.dot(onehot.reshape(bt * t_in, vocab_pad), table_ref[...],
                preferred_element_type=jnp.float32)
    x = x.astype(jnp.bfloat16).reshape(bt, t_in, c_in)               # (bt, t_in, C)

    # ---- all convs fused: max_k shifted-slice matmuls, f32 accumulation ----
    acc = jnp.dot(x[:, 0:t_out, :].reshape(bt * t_out, c_in), w_ref[0],
                  preferred_element_type=jnp.float32)
    for dk in range(1, max_k):
        xs = x[:, dk:dk + t_out, :].reshape(bt * t_out, c_in)
        acc = acc + jnp.dot(xs, w_ref[dk], preferred_element_type=jnp.float32)

    # ---- masked bias + ReLU + global max-pool over time ----
    # mbias holds the conv bias at valid positions and -1e30 elsewhere, so the
    # ReLU zeroes invalid positions and the global max is exact.
    h = jnp.maximum(acc.reshape(bt, t_out, n_pad) + mbias_ref[...][None, :, :], 0.0)
    if bf16_epilogue:              # v6e/v7x only: bf16 VPU, halves vreg pressure
        h = h.astype(jnp.bfloat16)  # (error << 2e-2 tolerance; f32 kept on v5e)
    enc = jnp.max(h, axis=1)                                         # (bt, n_pad)

    # ---- decoder; dropout(p=0.5) is eval-mode identity ----
    # TODO(synk): a training variant would draw the dropout mask here with
    # pltpu.prng_seed / pltpu.prng_random_bits.
    logits = jnp.dot(enc.astype(dec_w_ref.dtype), dec_w_ref[...],
                     preferred_element_type=jnp.float32) + dec_b_ref[...]
    out_ref[...] = logits                                 # lane-dense (bt, 128) store


def prepare_textcnn_params(params, kernel_sizes):
    """One-time fusion/padding of the PyTorch-style parameters."""
    conv_w = params["conv_w"]                              # list of (k, C_in, C_out)
    c_in = conv_w[0].shape[1]
    max_k = max(kernel_sizes)
    sum_c = sum(int(w.shape[-1]) for w in conv_w)
    n_pad = _round_up(sum_c, LANE)
    out_dim = params["dec_w"].shape[-1]
    out_pad = _round_up(out_dim, LANE)

    # Single embedding table (emb ++ const_emb); vocab padded to a lane multiple
    # so the in-kernel one-hot gather matmul is lane-dense.
    table = jnp.concatenate([params["emb"], params["const_emb"]], axis=-1)
    vocab = table.shape[0]
    vocab_pad = _round_up(vocab, LANE)
    table = jnp.pad(table, ((0, vocab_pad - vocab), (0, 0))).astype(jnp.bfloat16)

    # Fuse conv weights: pad each along k to max_k, concat along C_out, pad to 128.
    w_blocks = [jnp.pad(w, ((0, max_k - k), (0, 0), (0, 0)))
                for w, k in zip(conv_w, kernel_sizes)]
    w_fused = jnp.concatenate(w_blocks, axis=-1)           # (max_k, C_in, sum_C)
    w_fused = jnp.pad(w_fused, ((0, 0), (0, 0), (0, n_pad - sum_c))).astype(jnp.bfloat16)

    b_fused = jnp.concatenate([b.reshape(1, -1) for b in params["conv_b"]], axis=-1)
    b_fused = jnp.pad(b_fused, ((0, 0), (0, n_pad - sum_c))).astype(jnp.float32)

    dec_w = jnp.pad(params["dec_w"],
                    ((0, n_pad - sum_c), (0, out_pad - out_dim))).astype(jnp.bfloat16)
    dec_b = jnp.pad(params["dec_b"],
                    ((0, 0), (0, out_pad - out_dim))).astype(jnp.float32)

    return {"table": table, "w_fused": w_fused, "b_fused": b_fused,
            "dec_w": dec_w, "dec_b": dec_b}


def textcnn_forward(tokens, fused, *, kernel_sizes, num_channels,
                    num_classes=2, b_tile=None):
    """tokens: (B, T) int32 ids; fused: prepare_textcnn_params output.
    Returns (B, num_classes) f32 logits."""
    batch, seq_len = tokens.shape
    max_k, min_k = max(kernel_sizes), min(kernel_sizes)
    assert seq_len >= max_k, "sequence shorter than the widest conv kernel"

    table, w_fused, b_fused = fused["table"], fused["w_fused"], fused["b_fused"]
    dec_w, dec_b = fused["dec_w"], fused["dec_b"]
    vocab_pad, c_in = table.shape
    n_pad = w_fused.shape[-1]
    out_pad = dec_w.shape[-1]

    # Time padding: both the conv-output rows (t_out) and the embedded token
    # rows (t_in) are multiples of 8 so in-kernel reshapes are contiguous
    # sublane collapses and the time-axis max tiles cleanly.
    t_out = _round_up(seq_len - min_k + 1, SUBLANE)
    t_in = _round_up(t_out + max_k - 1, SUBLANE)
    tok = jnp.pad(tokens.astype(jnp.int32), ((0, 0), (0, t_in - seq_len)))

    # Bias with the validity mask folded in: bias at valid (t, conv-column),
    # -1e30 everywhere else (invalid tail positions, lane padding).
    valid = np.zeros((t_out, n_pad), bool)
    col = 0
    for c, k in zip(num_channels, kernel_sizes):
        valid[: seq_len - k + 1, col:col + c] = True
        col += c
    mbias = jnp.where(jnp.asarray(valid), b_fused, jnp.float32(-1e30))

    vmem_limit = _vmem_limit_bytes()
    if b_tile is None:
        b_tile = _pick_b_tile(
            batch,
            _bytes_per_batch_row(t_in, t_out, vocab_pad, c_in, n_pad, max_k, out_pad),
            vmem_limit)
    assert batch % b_tile == 0 and (b_tile % SUBLANE == 0 or b_tile == batch)
    grid = (batch // b_tile,)

    kernel = functools.partial(_textcnn_kernel, bf16_epilogue=_use_bf16_epilogue())
    const2 = lambda i: (0, 0)

    # NOTE: token tiles are tiny now; if xprof ever shows exposed DMA on them,
    # add pipeline_mode=pl.Buffered(3) to the token BlockSpec only.
    out = pl.pallas_call(
        kernel,
        out_shape=jax.ShapeDtypeStruct((batch, out_pad), jnp.float32),
        grid_spec=pltpu.PrefetchScalarGridSpec(
            num_scalar_prefetch=0,
            grid=grid,
            in_specs=[
                pl.BlockSpec((b_tile, t_in), lambda i: (i, 0)),        # token ids
                pl.BlockSpec((vocab_pad, c_in), const2),               # fused table
                pl.BlockSpec((max_k, c_in, n_pad), lambda i: (0, 0, 0)),
                pl.BlockSpec((t_out, n_pad), const2),                  # masked bias
                pl.BlockSpec((n_pad, out_pad), const2),                # decoder W
                pl.BlockSpec((1, out_pad), const2),                    # decoder b
            ],
            out_specs=pl.BlockSpec((b_tile, out_pad), lambda i: (i, 0)),
        ),
        compiler_params=pltpu.CompilerParams(
            dimension_semantics=("parallel",),    # megacore batch split on v7x
            vmem_limit_bytes=vmem_limit,
        ),
    )(tok, table, w_fused, mbias, dec_w, dec_b)

    return out[:, :num_classes]


def _reference_forward(tokens, params, kernel_sizes):
    """Pure-JAX f32 reference mirroring the PyTorch semantics."""
    emb = jnp.concatenate(
        [jnp.take(params["emb"], tokens, axis=0),
         jnp.take(params["const_emb"], tokens, axis=0)], axis=-1,
    ).astype(jnp.float32)                                  # (B, T, C_in)
    feats = []
    for i, k in enumerate(kernel_sizes):
        w = params["conv_w"][i]                            # (k, C_in, C_out)
        b = params["conv_b"][i][0]                         # (C_out,)
        T = emb.shape[1]
        t_out = T - k + 1
        acc = jnp.zeros((emb.shape[0], t_out, w.shape[-1]), jnp.float32)
        for dk in range(k):
            acc = acc + jnp.einsum("btc,co->bto", emb[:, dk:dk + t_out, :], w[dk])
        acc = jax.nn.relu(acc + b[None, None, :])
        feats.append(jnp.max(acc, axis=1))
    enc = jnp.concatenate(feats, axis=1)
    return enc @ params["dec_w"] + params["dec_b"][0][None, :]


def _init_params(key, vocab_size, embed_size, kernel_sizes, num_channels):
    keys = jax.random.split(key, 4 + 2 * len(kernel_sizes))
    c_in = 2 * embed_size
    params = {
        "emb": 0.1 * jax.random.normal(keys[0], (vocab_size, embed_size), jnp.float32),
        "const_emb": 0.1 * jax.random.normal(keys[1], (vocab_size, embed_size), jnp.float32),
        "dec_w": 0.1 * jax.random.normal(keys[2], (sum(num_channels), 2), jnp.float32),
        "dec_b": 0.1 * jax.random.normal(keys[3], (1, 2), jnp.float32),
        "conv_w": [],
        "conv_b": [],
    }
    for i, (c, k) in enumerate(zip(num_channels, kernel_sizes)):
        params["conv_w"].append(
            0.1 * jax.random.normal(keys[4 + 2 * i], (k, c_in, c), jnp.float32))
        params["conv_b"].append(
            0.1 * jax.random.normal(keys[5 + 2 * i], (1, c), jnp.float32))
    return params


if __name__ == "__main__":
    vocab_size = 50
    embed_size = 16
    kernel_sizes = (3, 4, 5)
    num_channels = (8, 16, 8)
    batch, seq_len = 16, 16      # auto tile -> b_tile=8, grid=(2,) (both v7x TCs busy)

    key = jax.random.PRNGKey(0)
    k_tok, k_par = jax.random.split(key)
    tokens = jax.random.randint(k_tok, (batch, seq_len), 0, vocab_size, dtype=jnp.int32)
    params = _init_params(k_par, vocab_size, embed_size, kernel_sizes, num_channels)

    fused = prepare_textcnn_params(params, kernel_sizes)

    fwd = jax.jit(functools.partial(
        textcnn_forward, kernel_sizes=kernel_sizes, num_channels=num_channels,
        num_classes=2))
    out = jax.block_until_ready(fwd(tokens, fused))

    ref = _reference_forward(tokens, params, kernel_sizes)
    np.testing.assert_allclose(np.asarray(out), np.asarray(ref), rtol=2e-2, atol=2e-2)
    assert out.shape == (batch, 2)
    print("KERNEL_OK")
</pallas_src>

<mosaic_0001>
module attributes {stable_mosaic.version = 11 : i64} {
  func.func @_textcnn_kernel(%arg0: i32, %arg1: memref<8x24xi32, #tpu.memory_space<vmem>>, %arg2: memref<128x32xbf16, #tpu.memory_space<vmem>>, %arg3: memref<5x32x128xbf16, #tpu.memory_space<vmem>>, %arg4: memref<16x128xf32, #tpu.memory_space<vmem>>, %arg5: memref<128x128xbf16, #tpu.memory_space<vmem>>, %arg6: memref<1x128xf32, #tpu.memory_space<vmem>>, %arg7: memref<8x128xf32, #tpu.memory_space<vmem>>) attributes {dimension_semantics = [#tpu.dimension_semantics<parallel>], iteration_bounds = array<i64: 2>, scalar_prefetch = 0 : i64, scratch_operands = 0 : i64, tpu.core_type = #tpu.core_type<tc>, window_params = [{transform_indices = @transform_0, window_bounds = array<i64: 8, 24>}, {pipeline_mode = #tpu.pipeline_mode<synchronous>, transform_indices = @transform_1, window_bounds = array<i64: 128, 32>}, {pipeline_mode = #tpu.pipeline_mode<synchronous>, transform_indices = @transform_2, window_bounds = array<i64: 5, 32, 128>}, {pipeline_mode = #tpu.pipeline_mode<synchronous>, transform_indices = @transform_3, window_bounds = array<i64: 16, 128>}, {pipeline_mode = #tpu.pipeline_mode<synchronous>, transform_indices = @transform_4, window_bounds = array<i64: 128, 128>}, {pipeline_mode = #tpu.pipeline_mode<synchronous>, transform_indices = @transform_5, window_bounds = array<i64: 1, 128>}, {transform_indices = @transform_6, window_bounds = array<i64: 8, 128>}]} {
    %c0 = arith.constant 0 : index
    %c0_0 = arith.constant 0 : index
    %0 = vector.load %arg1[%c0, %c0_0] : memref<8x24xi32, #tpu.memory_space<vmem>>, vector<8x24xi32>
    %1 = tpu.iota {dimensions = array<i32: 2>} : vector<8x24x128xi32>
    %2 = vector.shape_cast %0 : vector<8x24xi32> to vector<8x24x1xi32>
    %3 = vector.broadcast %2 : vector<8x24x1xi32> to vector<8x24x128xi32>
    %4 = arith.cmpi eq, %1, %3 : vector<8x24x128xi32>
    %5 = arith.extui %4 : vector<8x24x128xi1> to vector<8x24x128xi32>
    %6 = arith.sitofp %5 : vector<8x24x128xi32> to vector<8x24x128xf32>
    %7 = arith.truncf %6 : vector<8x24x128xf32> to vector<8x24x128xbf16>
    %8 = vector.shape_cast %7 : vector<8x24x128xbf16> to vector<192x128xbf16>
    %c0_1 = arith.constant 0 : index
    %c0_2 = arith.constant 0 : index
    %9 = vector.load %arg2[%c0_1, %c0_2] : memref<128x32xbf16, #tpu.memory_space<vmem>>, vector<128x32xbf16>
    %cst = arith.constant dense<0.000000e+00> : vector<192x32xf32>
    %10 = tpu.matmul %8, %9, %cst {dimension_numbers = #tpu.dot_dimension_numbers<[1], [0], [0], [1], [0, 0, 1, 1], [], []>} : vector<192x128xbf16>, vector<128x32xbf16>, vector<192x32xf32> -> vector<192x32xf32>
    %11 = arith.truncf %10 : vector<192x32xf32> to vector<192x32xbf16>
    %12 = vector.shape_cast %11 : vector<192x32xbf16> to vector<8x24x32xbf16>
    %13 = vector.extract_strided_slice %12 {offsets = [0, 0, 0], sizes = [8, 16, 32], strides = [1, 1, 1]} : vector<8x24x32xbf16> to vector<8x16x32xbf16>
    %14 = vector.shape_cast %13 : vector<8x16x32xbf16> to vector<128x32xbf16>
    %c0_3 = arith.constant 0 : index
    %c0_4 = arith.constant 0 : index
    %c0_5 = arith.constant 0 : index
    %15 = vector.load %arg3[%c0_3, %c0_4, %c0_5] : memref<5x32x128xbf16, #tpu.memory_space<vmem>>, vector<1x32x128xbf16>
    %16 = vector.shape_cast %15 : vector<1x32x128xbf16> to vector<32x128xbf16>
    %cst_6 = arith.constant dense<0.000000e+00> : vector<128x128xf32>
    %17 = tpu.matmul %14, %16, %cst_6 {dimension_numbers = #tpu.dot_dimension_numbers<[1], [0], [0], [1], [0, 0, 1, 1], [], []>} : vector<128x32xbf16>, vector<32x128xbf16>, vector<128x128xf32> -> vector<128x128xf32>
    %18 = vector.extract_strided_slice %12 {offsets = [0, 1, 0], sizes = [8, 16, 32], strides = [1, 1, 1]} : vector<8x24x32xbf16> to vector<8x16x32xbf16>
    %19 = vector.shape_cast %18 : vector<8x16x32xbf16> to vector<128x32xbf16>
    %c1 = arith.constant 1 : index
    %c0_7 = arith.constant 0 : index
    %c0_8 = arith.constant 0 : index
    %20 = vector.load %arg3[%c1, %c0_7, %c0_8] : memref<5x32x128xbf16, #tpu.memory_space<vmem>>, vector<1x32x128xbf16>
    %21 = vector.shape_cast %20 : vector<1x32x128xbf16> to vector<32x128xbf16>
    %cst_9 = arith.constant dense<0.000000e+00> : vector<128x128xf32>
    %22 = tpu.matmul %19, %21, %cst_9 {dimension_numbers = #tpu.dot_dimension_numbers<[1], [0], [0], [1], [0, 0, 1, 1], [], []>} : vector<128x32xbf16>, vector<32x128xbf16>, vector<128x128xf32> -> vector<128x128xf32>
    %23 = arith.addf %17, %22 : vector<128x128xf32>
    %24 = vector.extract_strided_slice %12 {offsets = [0, 2, 0], sizes = [8, 16, 32], strides = [1, 1, 1]} : vector<8x24x32xbf16> to vector<8x16x32xbf16>
    %25 = vector.shape_cast %24 : vector<8x16x32xbf16> to vector<128x32xbf16>
    %c2 = arith.constant 2 : index
    %c0_10 = arith.constant 0 : index
    %c0_11 = arith.constant 0 : index
    %26 = vector.load %arg3[%c2, %c0_10, %c0_11] : memref<5x32x128xbf16, #tpu.memory_space<vmem>>, vector<1x32x128xbf16>
    %27 = vector.shape_cast %26 : vector<1x32x128xbf16> to vector<32x128xbf16>
    %cst_12 = arith.constant dense<0.000000e+00> : vector<128x128xf32>
    %28 = tpu.matmul %25, %27, %cst_12 {dimension_numbers = #tpu.dot_dimension_numbers<[1], [0], [0], [1], [0, 0, 1, 1], [], []>} : vector<128x32xbf16>, vector<32x128xbf16>, vector<128x128xf32> -> vector<128x128xf32>
    %29 = arith.addf %23, %28 : vector<128x128xf32>
    %30 = vector.extract_strided_slice %12 {offsets = [0, 3, 0], sizes = [8, 16, 32], strides = [1, 1, 1]} : vector<8x24x32xbf16> to vector<8x16x32xbf16>
    %31 = vector.shape_cast %30 : vector<8x16x32xbf16> to vector<128x32xbf16>
    %c3 = arith.constant 3 : index
    %c0_13 = arith.constant 0 : index
    %c0_14 = arith.constant 0 : index
    %32 = vector.load %arg3[%c3, %c0_13, %c0_14] : memref<5x32x128xbf16, #tpu.memory_space<vmem>>, vector<1x32x128xbf16>
    %33 = vector.shape_cast %32 : vector<1x32x128xbf16> to vector<32x128xbf16>
    %cst_15 = arith.constant dense<0.000000e+00> : vector<128x128xf32>
    %34 = tpu.matmul %31, %33, %cst_15 {dimension_numbers = #tpu.dot_dimension_numbers<[1], [0], [0], [1], [0, 0, 1, 1], [], []>} : vector<128x32xbf16>, vector<32x128xbf16>, vector<128x128xf32> -> vector<128x128xf32>
    %35 = arith.addf %29, %34 : vector<128x128xf32>
    %36 = vector.extract_strided_slice %12 {offsets = [0, 4, 0], sizes = [8, 16, 32], strides = [1, 1, 1]} : vector<8x24x32xbf16> to vector<8x16x32xbf16>
    %37 = vector.shape_cast %36 : vector<8x16x32xbf16> to vector<128x32xbf16>
    %c4 = arith.constant 4 : index
    %c0_16 = arith.constant 0 : index
    %c0_17 = arith.constant 0 : index
    %38 = vector.load %arg3[%c4, %c0_16, %c0_17] : memref<5x32x128xbf16, #tpu.memory_space<vmem>>, vector<1x32x128xbf16>
    %39 = vector.shape_cast %38 : vector<1x32x128xbf16> to vector<32x128xbf16>
    %cst_18 = arith.constant dense<0.000000e+00> : vector<128x128xf32>
    %40 = tpu.matmul %37, %39, %cst_18 {dimension_numbers = #tpu.dot_dimension_numbers<[1], [0], [0], [1], [0, 0, 1, 1], [], []>} : vector<128x32xbf16>, vector<32x128xbf16>, vector<128x128xf32> -> vector<128x128xf32>
    %41 = arith.addf %35, %40 : vector<128x128xf32>
    %42 = vector.shape_cast %41 : vector<128x128xf32> to vector<8x16x128xf32>
    %c0_19 = arith.constant 0 : index
    %c0_20 = arith.constant 0 : index
    %43 = vector.load %arg4[%c0_19, %c0_20] : memref<16x128xf32, #tpu.memory_space<vmem>>, vector<16x128xf32>
    %44 = vector.shape_cast %43 : vector<16x128xf32> to vector<1x16x128xf32>
    %45 = vector.broadcast %44 : vector<1x16x128xf32> to vector<8x16x128xf32>
    %46 = arith.addf %42, %45 : vector<8x16x128xf32>
    %cst_21 = arith.constant 0.000000e+00 : f32
    %47 = vector.broadcast %cst_21 : f32 to vector<8x16x128xf32>
    %48 = arith.maximumf %46, %47 : vector<8x16x128xf32>
    %cst_22 = arith.constant dense<0xFF800000> : vector<8x128xf32>
    %49 = vector.multi_reduction <maximumf>, %48, %cst_22 [1] : vector<8x16x128xf32> to vector<8x128xf32>
    %50 = arith.truncf %49 : vector<8x128xf32> to vector<8x128xbf16>
    %c0_23 = arith.constant 0 : index
    %c0_24 = arith.constant 0 : index
    %51 = vector.load %arg5[%c0_23, %c0_24] : memref<128x128xbf16, #tpu.memory_space<vmem>>, vector<128x128xbf16>
    %cst_25 = arith.constant dense<0.000000e+00> : vector<8x128xf32>
    %52 = tpu.matmul %50, %51, %cst_25 {dimension_numbers = #tpu.dot_dimension_numbers<[1], [0], [0], [1], [0, 0, 1, 1], [], []>} : vector<8x128xbf16>, vector<128x128xbf16>, vector<8x128xf32> -> vector<8x128xf32>
    %c0_26 = arith.constant 0 : index
    %c0_27 = arith.constant 0 : index
    %53 = vector.load %arg6[%c0_26, %c0_27] : memref<1x128xf32, #tpu.memory_space<vmem>>, vector<1x128xf32>
    %54 = vector.broadcast %53 : vector<1x128xf32> to vector<8x128xf32>
    %55 = arith.addf %52, %54 : vector<8x128xf32>
    %c0_28 = arith.constant 0 : index
    %c0_29 = arith.constant 0 : index
    %56 = vector.load %arg7[%c0_28, %c0_29] : memref<8x128xf32, #tpu.memory_space<vmem>>, vector<8x128xf32>
    tpu.vector_store %arg7[%c0_28, %c0_29], %55 {strides = array<i32>} : memref<8x128xf32, #tpu.memory_space<vmem>>, vector<8x128xf32>,
    return
  }
  func.func @transform_0(%arg0: i32) -> (i32, i32) {
    %c0_i32 = arith.constant 0 : i32
    %c0_i32_0 = arith.constant 0 : i32
    return %arg0, %c0_i32 : i32, i32
  }
  func.func @transform_1(%arg0: i32) -> (i32, i32) {
    %c0_i32 = arith.constant 0 : i32
    %c0_i32_0 = arith.constant 0 : i32
    %c0_i32_1 = arith.constant 0 : i32
    return %c0_i32, %c0_i32_0 : i32, i32
  }
  func.func @transform_2(%arg0: i32) -> (i32, i32, i32) {
    %c0_i32 = arith.constant 0 : i32
    %c0_i32_0 = arith.constant 0 : i32
    %c0_i32_1 = arith.constant 0 : i32
    %c0_i32_2 = arith.constant 0 : i32
    return %c0_i32, %c0_i32_0, %c0_i32_1 : i32, i32, i32
  }
  func.func @transform_3(%arg0: i32) -> (i32, i32) {
    %c0_i32 = arith.constant 0 : i32
    %c0_i32_0 = arith.constant 0 : i32
    %c0_i32_1 = arith.constant 0 : i32
    return %c0_i32, %c0_i32_0 : i32, i32
  }
  func.func @transform_4(%arg0: i32) -> (i32, i32) {
    %c0_i32 = arith.constant 0 : i32
    %c0_i32_0 = arith.constant 0 : i32
    %c0_i32_1 = arith.constant 0 : i32
    return %c0_i32, %c0_i32_0 : i32, i32
  }
  func.func @transform_5(%arg0: i32) -> (i32, i32) {
    %c0_i32 = arith.constant 0 : i32
    %c0_i32_0 = arith.constant 0 : i32
    %c0_i32_1 = arith.constant 0 : i32
    return %c0_i32, %c0_i32_0 : i32, i32
  }
  func.func @transform_6(%arg0: i32) -> (i32, i32) {
    %c0_i32 = arith.constant 0 : i32
    %c0_i32_0 = arith.constant 0 : i32
    return %arg0, %c0_i32 : i32, i32
  }
}

</mosaic_0001>

<llo_original>
// kernel: textcnn_forward.1
$region0: #{textcnn_forward.1}
  #allocation0 [shape = 'u32[]', space=smem, size = 0x4, offset = 0x4, fixed_abs, tag = 'smem constant byte address 0x4 - core index']
  #allocation1 [shape = 'u32[144,128]{1,0:T(1,128)}', space=vmem, size = 0x12000, scoped, tag = 'internal scratch']
  %s0 = inlined_call_operand.vmem [shape: s32[16,24], index: 0, kind: input, shape index: {}]
  %s1 = inlined_call_operand.vmem [shape: bf16[128,32], index: 1, kind: input, shape index: {}]
  %s2 = inlined_call_operand.vmem [shape: bf16[5,32,128], index: 2, kind: input, shape index: {}]
  %s3 = inlined_call_operand.vmem [shape: f32[16,128], index: 3, kind: input, shape index: {}]
  %s4 = inlined_call_operand.vmem [shape: bf16[128,128], index: 4, kind: input, shape index: {}]
  %s5 = inlined_call_operand.vmem [shape: f32[1,128], index: 5, kind: input, shape index: {}]
  %s6 = inlined_call_operand.vmem [shape: f32[16,128], index: 6, kind: output, shape index: {}]
  %s7 = sld [smem:[#allocation0]]
  $region57: #{textcnn_forward.1} parent=0
    _
  %s9 = ssub.s32 1, %s7
  %s10 = scalar_select 0, %s9, %s7
  loop: start=0, step=1, limit=4
  $region2: #{textcnn_forward.1} parent=0 // loop_pre_header
    _
  $region3: #{textcnn_forward.1} parent=0 // loop_header
    %s12 = sphi 0, %s16
    %p13 = scmp.ge.s32.totalorder %s12, 4
    %s22 = sphi 0, %s24
    %s25 = sphi 0, %s22
    %s26 = sphi 0, %s25
    %s42 = sphi 0, %s26
    %s46 = sphi 0, %s46
    %s48 = sphi 0, %s46
    %s49 = sphi 0, %s48
    %s63 = sphi 0, %s49
    %s67 = sphi 0, %s67
    %s69 = sphi 0, %s67
    %s70 = sphi 0, %s69
    %s84 = sphi 0, %s70
    %s88 = sphi 0, %s88
    %s90 = sphi 0, %s88
    %s91 = sphi 0, %s90
    %s105 = sphi 0, %s91
    %s109 = sphi 0, %s109
    %s111 = sphi 0, %s109
    %s112 = sphi 0, %s111
    %s126 = sphi 0, %s112
    %s130 = sphi 0, %s130
    %s132 = sphi 0, %s130
    %s133 = sphi 0, %s132
    %s147 = sphi 0, %s133
    %s153 = sphi 0, %s155
    %s156 = sphi 0, %s153
    %s157 = sphi 0, %s156
    %s173 = sphi 0, %s157
  $region4: #{textcnn_forward.1} parent=0 // loop_header_branch
    %15 = sbr.rel (%p13) target = $region8
  $region5: #{textcnn_forward.1} parent=0 // loop_body
    %s17 = ssub.s32 %s12, 1
    %s18 = ssub.s32 %s12, 2
    %s19 = sadd.s32 %s12, 1
    %s20 = ssub.s32 %s12, %s19
    %p21 = scmp.eq.s32.totalorder %s20, 0
    %s23 = sadd.s32 %s22, 1
    %s24 = scalar_select %p21, %s22, %s23
    %p27 = pneg %p21
    %p28 = scmp.eq.s32.totalorder %s12, 1
    %p29 = por %p27, %p28
    %p30 = scmp.ne.s32.totalorder %s22, %s25
    %p31 = scmp.eq.s32.totalorder %s12, 0
    %p32 = por %p30, %p31
    %p33 = scmp.ne.s32.totalorder %s22, %s25
    %p34 = scmp.eq.s32.totalorder %s17, 1
    %p35 = por %p33, %p34
    %p36 = scmp.ne.s32.totalorder %s25, %s26
    %p37 = scmp.eq.s32.totalorder %s17, 0
    %p38 = por %p36, %p37
    %p39 = scmp.ne.s32.totalorder %s25, %s26
    %p40 = scmp.eq.s32.totalorder %s18, 1
    %p41 = por %p39, %p40
    %p43 = scmp.ne.s32.totalorder %s26, %s42
    %p44 = scmp.eq.s32.totalorder %s18, 0
    %p45 = por %p43, %p44
    %s47 = sadd.s32 %s46, 1
    %p50 = scmp.eq.s32.totalorder %s12, 1
    %p51 = scmp.ne.s32.totalorder %s46, %s48
    %p52 = scmp.eq.s32.totalorder %s12, 0
    %p53 = por %p51, %p52
    %p54 = scmp.ne.s32.totalorder %s46, %s48
    %p55 = scmp.eq.s32.totalorder %s17, 1
    %p56 = por %p54, %p55
    %p57 = scmp.ne.s32.totalorder %s48, %s49
    %p58 = scmp.eq.s32.totalorder %s17, 0
    %p59 = por %p57, %p58
    %p60 = scmp.ne.s32.totalorder %s48, %s49
    %p61 = scmp.eq.s32.totalorder %s18, 1
    %p62 = por %p60, %p61
    %p64 = scmp.ne.s32.totalorder %s49, %s63
    %p65 = scmp.eq.s32.totalorder %s18, 0
    %p66 = por %p64, %p65
    %s68 = sadd.s32 %s67, 1
    %p71 = scmp.eq.s32.totalorder %s12, 1
    %p72 = scmp.ne.s32.totalorder %s67, %s69
    %p73 = scmp.eq.s32.totalorder %s12, 0
    %p74 = por %p72, %p73
    %p75 = scmp.ne.s32.totalorder %s67, %s69
    %p76 = scmp.eq.s32.totalorder %s17, 1
    %p77 = por %p75, %p76
    %p78 = scmp.ne.s32.totalorder %s69, %s70
    %p79 = scmp.eq.s32.totalorder %s17, 0
    %p80 = por %p78, %p79
    %p81 = scmp.ne.s32.totalorder %s69, %s70
    %p82 = scmp.eq.s32.totalorder %s18, 1
    %p83 = por %p81, %p82
    %p85 = scmp.ne.s32.totalorder %s70, %s84
    %p86 = scmp.eq.s32.totalorder %s18, 0
    %p87 = por %p85, %p86
    %s89 = sadd.s32 %s88, 1
    %p92 = scmp.eq.s32.totalorder %s12, 1
    %p93 = scmp.ne.s32.totalorder %s88, %s90
    %p94 = scmp.eq.s32.totalorder %s12, 0
    %p95 = por %p93, %p94
    %p96 = scmp.ne.s32.totalorder %s88, %s90
    %p97 = scmp.eq.s32.totalorder %s17, 1
    %p98 = por %p96, %p97
    %p99 = scmp.ne.s32.totalorder %s90, %s91
    %p100 = scmp.eq.s32.totalorder %s17, 0
    %p101 = por %p99, %p100
    %p102 = scmp.ne.s32.totalorder %s90, %s91
    %p103 = scmp.eq.s32.totalorder %s18, 1
    %p104 = por %p102, %p103
    %p106 = scmp.ne.s32.totalorder %s91, %s105
    %p107 = scmp.eq.s32.totalorder %s18, 0
    %p108 = por %p106, %p107
    %s110 = sadd.s32 %s109, 1
    %p113 = scmp.eq.s32.totalorder %s12, 1
    %p114 = scmp.ne.s32.totalorder %s109, %s111
    %p115 = scmp.eq.s32.totalorder %s12, 0
    %p116 = por %p114, %p115
    %p117 = scmp.ne.s32.totalorder %s109, %s111
    %p118 = scmp.eq.s32.totalorder %s17, 1
    %p119 = por %p117, %p118
    %p120 = scmp.ne.s32.totalorder %s111, %s112
    %p121 = scmp.eq.s32.totalorder %s17, 0
    %p122 = por %p120, %p121
    %p123 = scmp.ne.s32.totalorder %s111, %s112
    %p124 = scmp.eq.s32.totalorder %s18, 1
    %p125 = por %p123, %p124
    %p127 = scmp.ne.s32.totalorder %s112, %s126
    %p128 = scmp.eq.s32.totalorder %s18, 0
    %p129 = por %p127, %p128
    %s131 = sadd.s32 %s130, 1
    %p134 = scmp.eq.s32.totalorder %s12, 1
    %p135 = scmp.ne.s32.totalorder %s130, %s132
    %p136 = scmp.eq.s32.totalorder %s12, 0
    %p137 = por %p135, %p136
    %p138 = scmp.ne.s32.totalorder %s130, %s132
    %p139 = scmp.eq.s32.totalorder %s17, 1
    %p140 = por %p138, %p139
    %p141 = scmp.ne.s32.totalorder %s132, %s133
    %p142 = scmp.eq.s32.totalorder %s17, 0
    %p143 = por %p141, %p142
    %p144 = scmp.ne.s32.totalorder %s132, %s133
    %p145 = scmp.eq.s32.totalorder %s18, 1
    %p146 = por %p144, %p145
    %p148 = scmp.ne.s32.totalorder %s133, %s147
    %p149 = scmp.eq.s32.totalorder %s18, 0
    %p150 = por %p148, %p149
    %s151 = ssub.s32 %s12, %s19
    %p152 = scmp.eq.s32.totalorder %s151, 0
    %s154 = sadd.s32 %s153, 1
    %s155 = scalar_select %p152, %s153, %s154
    %p158 = pneg %p152
    %p159 = scmp.eq.s32.totalorder %s12, 1
    %p160 = por %p158, %p159
    %p161 = scmp.ne.s32.totalorder %s153, %s156
    %p162 = scmp.eq.s32.totalorder %s12, 0
    %p163 = por %p161, %p162
    %p164 = scmp.ne.s32.totalorder %s153, %s156
    %p165 = scmp.eq.s32.totalorder %s17, 1
    %p166 = por %p164, %p165
    %p167 = scmp.ne.s32.totalorder %s156, %s157
    %p168 = scmp.eq.s32.totalorder %s17, 0
    %p169 = por %p167, %p168
    %p170 = scmp.ne.s32.totalorder %s156, %s157
    %p171 = scmp.eq.s32.totalorder %s18, 1
    %p172 = por %p170, %p171
    %p174 = scmp.ne.s32.totalorder %s157, %s173
    %p175 = scmp.eq.s32.totalorder %s18, 0
    %p176 = por %p174, %p175
    %p177 = scmp.le.s32.totalorder 1, %s12
    %p178 = scmp.lt.s32.totalorder %s12, 3
    %p179 = pnand %p177, %p178
    %p180 = pneg %p179
    // Predicated region
    $region9: #{textcnn_forward.1} parent=5 // pred_check
      _
    $region10: #{textcnn_forward.1} parent=5 // pred_check_branch
      %182 = sbr.rel (%p179) target = $region12
    $region11: #{textcnn_forward.1} parent=5 // pred_region
      %s183 = ssub.s32 %s12, 1
      // Predicated region
      $region13: #{textcnn_forward.1} parent=11 // pred_check
        %p184 = pneg %p59
      $region14: #{textcnn_forward.1} parent=11 // pred_check_branch
        %186 = sbr.rel (%p184) target = $region16
      $region15: #{textcnn_forward.1} parent=11 // pred_region
        _
      $region16: #{textcnn_forward.1} parent=11 // pred_fallthru
        _
      // Predicated region
      $region17: #{textcnn_forward.1} parent=11 // pred_check
        %p187 = pneg %p80
      $region18: #{textcnn_forward.1} parent=11 // pred_check_branch
        %189 = sbr.rel (%p187) target = $region20
      $region19: #{textcnn_forward.1} parent=11 // pred_region
        _
      $region20: #{textcnn_forward.1} parent=11 // pred_fallthru
        _
      // Predicated region
      $region21: #{textcnn_forward.1} parent=11 // pred_check
        %p190 = pneg %p101
      $region22: #{textcnn_forward.1} parent=11 // pred_check_branch
        %192 = sbr.rel (%p190) target = $region24
      $region23: #{textcnn_forward.1} parent=11 // pred_region
        _
      $region24: #{textcnn_forward.1} parent=11 // pred_fallthru
        _
      // Predicated region
      $region25: #{textcnn_forward.1} parent=11 // pred_check
        %p193 = pneg %p122
      $region26: #{textcnn_forward.1} parent=11 // pred_check_branch
        %195 = sbr.rel (%p193) target = $region28
      $region27: #{textcnn_forward.1} parent=11 // pred_region
        _
      $region28: #{textcnn_forward.1} parent=11 // pred_fallthru
        _
      // Predicated region
      $region29: #{textcnn_forward.1} parent=11 // pred_check
        %p196 = pneg %p143
      $region30: #{textcnn_forward.1} parent=11 // pred_check_branch
        %198 = sbr.rel (%p196) target = $region32
      $region31: #{textcnn_forward.1} parent=11 // pred_region
        _
      $region32: #{textcnn_forward.1} parent=11 // pred_fallthru
        _
    $region12: #{textcnn_forward.1} parent=5 // pred_fallthru
      _
    %p199 = scmp.lt.s32.totalorder %s12, 2
    // Predicated region
    $region33: #{textcnn_forward.1} parent=5 // pred_check
      %p200 = pneg %p199
    $region34: #{textcnn_forward.1} parent=5 // pred_check_branch
      %202 = sbr.rel (%p200) target = $region36
    $region35: #{textcnn_forward.1} parent=5 // pred_region
      // Predicated region
      $region37: #{textcnn_forward.1} parent=35 // pred_check
        %p203 = pneg %p32
      $region38: #{textcnn_forward.1} parent=35 // pred_check_branch
        %205 = sbr.rel (%p203) target = $region40
      $region39: #{textcnn_forward.1} parent=35 // pred_region
        %p206 = scmp.lt.s32.totalorder %s12, 1
        %s207 = scalar_select %p206, %s12, 1
        %s208 = smul.addr %s207, 8
        %s209 = scalar_lea.vmem %s0, %s208
      $region40: #{textcnn_forward.1} parent=35 // pred_fallthru
        _
    $region36: #{textcnn_forward.1} parent=5 // pred_fallthru
      _
    %p210 = scmp.le.s32.totalorder 1, %s12
    %p211 = scmp.lt.s32.totalorder %s12, 3
    %p212 = pnand %p210, %p211
    %p213 = pneg %p212
    // Predicated region
    $region41: #{textcnn_forward.1} parent=5 // pred_check
      _
    $region42: #{textcnn_forward.1} parent=5 // pred_check_branch
      %215 = sbr.rel (%p212) target = $region44
    $region43: #{textcnn_forward.1} parent=5 // pred_region
      %s216 = ssub.s32 %s12, 1
      %p217 = scmp.lt.s32.totalorder %s17, 1
      %s218 = scalar_select %p217, %s17, 1
      %s219 = smul.addr %s218, 8
      %s220 = scalar_lea.vmem %s0, %s219
      %p221 = pneg %p38
      %p222 = pneg %p35
      %p223 = pneg %p59
      %p224 = pneg %p56
      %p225 = pneg %p80
      %p226 = pneg %p77
      %p227 = pneg %p101
      %p228 = pneg %p98
      %p229 = pneg %p122
      %p230 = pneg %p119
      %p231 = pneg %p143
      %p232 = pneg %p140
      %p233 = pneg %p169
      %p234 = pneg %p166
      %p235 = scmp.lt.s32.totalorder %s17, 1
      %s236 = scalar_select %p235, %s17, 1
      %s237 = smul.addr %s236, 8
      %s238 = scalar_lea.vmem %s6, %s237
      %p239 = scmp.lt.s32.totalorder %s17, 1
      %s240 = scalar_select %p239, %s17, 1
      %s241 = smul.addr %s240, 8
      %s242 = scalar_lea.vmem %s0, %s241
      %p243 = scmp.lt.s32.totalorder %s17, 1
      %s244 = scalar_select %p243, %s17, 1
      %s245 = smul.addr %s244, 8
      %s246 = scalar_lea.vmem %s6, %s245
      %v248 = vld [vmem:[%s242] sm:$0xff]
      %v249 = vlaneseq
      %v250 = vand.u32 %v249, 127
      %v251 = vlaneseq
      %v252 = vshrl.u32 %v251, 7
      %v253 = vsub.s32 0, %v252
      %v254 = vrot.slane %v248, %v253
      %256 = vbcast.lane.b32.xlu0 %v254, 256
      %v257 = vpop.permute.xlu0 %256
      %s259 = sor.u32 256, 8
      %260 = vbcast.lane.b32.xlu0 %v254, %s259
      %v261 = vpop.permute.xlu0 %260
      %s263 = sor.u32 256, 16
      %264 = vbcast.lane.b32.xlu0 %v254, %s263
      %v265 = vpop.permute.xlu0 %264
      %v266 = vlaneseq
      %v267 = vshrl.u32 %v266, 7
      %v268 = vsub.s32 1, %v267
      %v269 = vrot.slane %v248, %v268
      %271 = vbcast.lane.b32.xlu0 %v269, 256
      %v272 = vpop.permute.xlu0 %271
      %s274 = sor.u32 256, 8
      %275 = vbcast.lane.b32.xlu0 %v269, %s274
      %v276 = vpop.permute.xlu0 %275
      %s278 = sor.u32 256, 16
      %279 = vbcast.lane.b32.xlu0 %v269, %s278
      %v280 = vpop.permute.xlu0 %279
      %v281 = vlaneseq
      %v282 = vshrl.u32 %v281, 7
      %v283 = vsub.s32 2, %v282
      %v284 = vrot.slane %v248, %v283
      %286 = vbcast.lane.b32.xlu0 %v284, 256
      %v287 = vpop.permute.xlu0 %286
      %s289 = sor.u32 256, 8
      %290 = vbcast.lane.b32.xlu0 %v284, %s289
      %v291 = vpop.permute.xlu0 %290
      %s293 = sor.u32 256, 16
      %294 = vbcast.lane.b32.xlu0 %v284, %s293
      %v295 = vpop.permute.xlu0 %294
      %v296 = vlaneseq
      %v297 = vshrl.u32 %v296, 7
      %v298 = vsub.s32 3, %v297
      %v299 = vrot.slane %v248, %v298
      %301 = vbcast.lane.b32.xlu0 %v299, 256
      %v302 = vpop.permute.xlu0 %301
      %s304 = sor.u32 256, 8
      %305 = vbcast.lane.b32.xlu0 %v299, %s304
      %v306 = vpop.permute.xlu0 %305
      %s308 = sor.u32 256, 16
      %309 = vbcast.lane.b32.xlu0 %v299, %s308
      %v310 = vpop.permute.xlu0 %309
      %v311 = vlaneseq
      %v312 = vshrl.u32 %v311, 7
      %v313 = vsub.s32 4, %v312
      %v314 = vrot.slane %v248, %v313
      %316 = vbcast.lane.b32.xlu0 %v314, 256
      %v317 = vpop.permute.xlu0 %316
      %s319 = sor.u32 256, 8
      %320 = vbcast.lane.b32.xlu0 %v314, %s319
      %v321 = vpop.permute.xlu0 %320
      %s323 = sor.u32 256, 16
      %324 = vbcast.lane.b32.xlu0 %v314, %s323
      %v325 = vpop.permute.xlu0 %324
      %v326 = vlaneseq
      %v327 = vshrl.u32 %v326, 7
      %v328 = vsub.s32 5, %v327
      %v329 = vrot.slane %v248, %v328
      %331 = vbcast.lane.b32.xlu0 %v329, 256
      %v332 = vpop.permute.xlu0 %331
      %s334 = sor.u32 256, 8
      %335 = vbcast.lane.b32.xlu0 %v329, %s334
      %v336 = vpop.permute.xlu0 %335
      %s338 = sor.u32 256, 16
      %339 = vbcast.lane.b32.xlu0 %v329, %s338
      %v340 = vpop.permute.xlu0 %339
      %v341 = vlaneseq
      %v342 = vshrl.u32 %v341, 7
      %v343 = vsub.s32 6, %v342
      %v344 = vrot.slane %v248, %v343
      %346 = vbcast.lane.b32.xlu0 %v344, 256
      %v347 = vpop.permute.xlu0 %346
      %s349 = sor.u32 256, 8
      %350 = vbcast.lane.b32.xlu0 %v344, %s349
      %v351 = vpop.permute.xlu0 %350
      %s353 = sor.u32 256, 16
      %354 = vbcast.lane.b32.xlu0 %v344, %s353
      %v355 = vpop.permute.xlu0 %354
      %v356 = vlaneseq
      %v357 = vshrl.u32 %v356, 7
      %v358 = vsub.s32 7, %v357
      %v359 = vrot.slane %v248, %v358
      %361 = vbcast.lane.b32.xlu0 %v359, 256
      %v362 = vpop.permute.xlu0 %361
      %s364 = sor.u32 256, 8
      %365 = vbcast.lane.b32.xlu0 %v359, %s364
      %v366 = vpop.permute.xlu0 %365
      %s368 = sor.u32 256, 16
      %369 = vbcast.lane.b32.xlu0 %v359, %s368
      %v370 = vpop.permute.xlu0 %369
      %vm371 = vcmp.eq.s32.totalorder %v250, %v257
      %vm372 = vcmp.eq.s32.totalorder %v250, %v261
      %vm373 = vcmp.eq.s32.totalorder %v250, %v265
      %vm374 = vcmp.eq.s32.totalorder %v250, %v272
      %vm375 = vcmp.eq.s32.totalorder %v250, %v276
      %vm376 = vcmp.eq.s32.totalorder %v250, %v280
      %vm377 = vcmp.eq.s32.totalorder %v250, %v287
      %vm378 = vcmp.eq.s32.totalorder %v250, %v291
      %vm379 = vcmp.eq.s32.totalorder %v250, %v295
      %vm380 = vcmp.eq.s32.totalorder %v250, %v302
      %vm381 = vcmp.eq.s32.totalorder %v250, %v306
      %vm382 = vcmp.eq.s32.totalorder %v250, %v310
      %vm383 = vcmp.eq.s32.totalorder %v250, %v317
      %vm384 = vcmp.eq.s32.totalorder %v250, %v321
      %vm385 = vcmp.eq.s32.totalorder %v250, %v325
      %vm386 = vcmp.eq.s32.totalorder %v250, %v332
      %vm387 = vcmp.eq.s32.totalorder %v250, %v336
      %vm388 = vcmp.eq.s32.totalorder %v250, %v340
      %vm389 = vcmp.eq.s32.totalorder %v250, %v347
      %vm390 = vcmp.eq.s32.totalorder %v250, %v351
      %vm391 = vcmp.eq.s32.totalorder %v250, %v355
      %vm392 = vcmp.eq.s32.totalorder %v250, %v362
      %vm393 = vcmp.eq.s32.totalorder %v250, %v366
      %vm394 = vcmp.eq.s32.totalorder %v250, %v370
      %v395 = vsel %vm371, 1, 0
      %v396 = vsel %vm372, 1, 0
      %v397 = vsel %vm373, 1, 0
      %v398 = vsel %vm374, 1, 0
      %v399 = vsel %vm375, 1, 0
      %v400 = vsel %vm376, 1, 0
      %v401 = vsel %vm377, 1, 0
      %v402 = vsel %vm378, 1, 0
      %v403 = vsel %vm379, 1, 0
      %v404 = vsel %vm380, 1, 0
      %v405 = vsel %vm381, 1, 0
      %v406 = vsel %vm382, 1, 0
      %v407 = vsel %vm383, 1, 0
      %v408 = vsel %vm384, 1, 0
      %v409 = vsel %vm385, 1, 0
      %v410 = vsel %vm386, 1, 0
      %v411 = vsel %vm387, 1, 0
      %v412 = vsel %vm388, 1, 0
      %v413 = vsel %vm389, 1, 0
      %v414 = vsel %vm390, 1, 0
      %v415 = vsel %vm391, 1, 0
      %v416 = vsel %vm392, 1, 0
      %v417 = vsel %vm393, 1, 0
      %v418 = vsel %vm394, 1, 0
      %v419 = vcvt.s32.f32 %v395
      %v420 = vcvt.s32.f32 %v396
      %v421 = vcvt.s32.f32 %v397
      %v422 = vcvt.s32.f32 %v398
      %v423 = vcvt.s32.f32 %v399
      %v424 = vcvt.s32.f32 %v400
      %v425 = vcvt.s32.f32 %v401
      %v426 = vcvt.s32.f32 %v402
      %v427 = vcvt.s32.f32 %v403
      %v428 = vcvt.s32.f32 %v404
      %v429 = vcvt.s32.f32 %v405
      %v430 = vcvt.s32.f32 %v406
      %v431 = vcvt.s32.f32 %v407
      %v432 = vcvt.s32.f32 %v408
      %v433 = vcvt.s32.f32 %v409
      %v434 = vcvt.s32.f32 %v410
      %v435 = vcvt.s32.f32 %v411
      %v436 = vcvt.s32.f32 %v412
      %v437 = vcvt.s32.f32 %v413
      %v438 = vcvt.s32.f32 %v414
      %v439 = vcvt.s32.f32 %v415
      %v440 = vcvt.s32.f32 %v416
      %v441 = vcvt.s32.f32 %v417
      %v442 = vcvt.s32.f32 %v418
      %v443 = vpack.c.bf16 %v420, %v419
      %v444 = vpack.c.bf16 %v421, %v421
      %v445 = vpack.c.bf16 %v423, %v422
      %v446 = vpack.c.bf16 %v424, %v424
      %v447 = vpack.c.bf16 %v426, %v425
      %v448 = vpack.c.bf16 %v427, %v427
      %v449 = vpack.c.bf16 %v429, %v428
      %v450 = vpack.c.bf16 %v430, %v430
      %v451 = vpack.c.bf16 %v432, %v431
      %v452 = vpack.c.bf16 %v433, %v433
      %v453 = vpack.c.bf16 %v435, %v434
      %v454 = vpack.c.bf16 %v436, %v436
      %v455 = vpack.c.bf16 %v438, %v437
      %v456 = vpack.c.bf16 %v439, %v439
      %v457 = vpack.c.bf16 %v441, %v440
      %v458 = vpack.c.bf16 %v442, %v442
      %v475 = vunpack.c.l.b16 %v443
      %v476 = vunpack.c.h.b16 %v443
      %v477 = vunpack.c.l.b16 %v444
      %v478 = vunpack.c.l.b16 %v445
      %v479 = vunpack.c.h.b16 %v445
      %v480 = vunpack.c.l.b16 %v446
      %v481 = vunpack.c.l.b16 %v447
      %v482 = vunpack.c.h.b16 %v447
      %v483 = vunpack.c.l.b16 %v448
      %v484 = vunpack.c.l.b16 %v449
      %v485 = vunpack.c.h.b16 %v449
      %v486 = vunpack.c.l.b16 %v450
      %v487 = vunpack.c.l.b16 %v451
      %v488 = vunpack.c.h.b16 %v451
      %v489 = vunpack.c.l.b16 %v452
      %v490 = vunpack.c.l.b16 %v453
      %v491 = vunpack.c.h.b16 %v453
      %v492 = vunpack.c.l.b16 %v454
      %v493 = vunpack.c.l.b16 %v455
      %v494 = vunpack.c.h.b16 %v455
      %v495 = vunpack.c.l.b16 %v456
      %v496 = vunpack.c.l.b16 %v457
      %v497 = vunpack.c.h.b16 %v457
      %v498 = vunpack.c.l.b16 %v458
      %v499 = vld [vmem:[%s1] sm:$0xf]
      %v500 = vld [vmem:[%s1 + $0x4] sm:$0xf]
      %v501 = vld [vmem:[%s1 + $0x8] sm:$0xf]
      %v502 = vld [vmem:[%s1 + $0xc] sm:$0xf]
      %v503 = vld [vmem:[%s1 + $0x10] sm:$0xf]
      %v504 = vld [vmem:[%s1 + $0x14] sm:$0xf]
      %v505 = vld [vmem:[%s1 + $0x18] sm:$0xf]
      %v506 = vld [vmem:[%s1 + $0x1c] sm:$0xf]
      %v507 = vld [vmem:[%s1 + $0x20] sm:$0xf]
      %v508 = vld [vmem:[%s1 + $0x24] sm:$0xf]
      %v509 = vld [vmem:[%s1 + $0x28] sm:$0xf]
      %v510 = vld [vmem:[%s1 + $0x2c] sm:$0xf]
      %v511 = vld [vmem:[%s1 + $0x30] sm:$0xf]
      %v512 = vld [vmem:[%s1 + $0x34] sm:$0xf]
      %v513 = vld [vmem:[%s1 + $0x38] sm:$0xf]
      %v514 = vld [vmem:[%s1 + $0x3c] sm:$0xf]
      %v515 = vpack.c.b16 %v476, %v475
      %v516 = vpack.c.b16 %v478, %v477
      %v517 = vpack.c.b16 %v480, %v479
      %v518 = vpack.c.b16 %v482, %v481
      %v519 = vpack.c.b16 %v484, %v483
      %v520 = vpack.c.b16 %v486, %v485
      %v521 = vpack.c.b16 %v488, %v487
      %v522 = vpack.c.b16 %v490, %v489
      %v523 = vpack.c.b16 %v492, %v491
      %v524 = vpack.c.b16 %v494, %v493
      %v525 = vpack.c.b16 %v496, %v495
      %v526 = vpack.c.b16 %v498, %v497
      %v555 = vunpack.c.l.b16 %v499
      %v556 = vunpack.c.l.b16 %v500
      %v557 = vunpack.c.l.b16 %v501
      %v558 = vunpack.c.l.b16 %v502
      %v559 = vunpack.c.l.b16 %v503
      %v560 = vunpack.c.l.b16 %v504
      %v561 = vunpack.c.l.b16 %v505
      %v562 = vunpack.c.l.b16 %v506
      %v563 = vunpack.c.l.b16 %v507
      %v564 = vunpack.c.l.b16 %v508
      %v565 = vunpack.c.l.b16 %v509
      %v566 = vunpack.c.l.b16 %v510
      %v567 = vunpack.c.l.b16 %v511
      %v568 = vunpack.c.l.b16 %v512
      %v569 = vunpack.c.l.b16 %v513
      %v570 = vunpack.c.l.b16 %v514
      %v571 = vpack.c.b16 %v556, %v555
      %v572 = vpack.c.b16 %v558, %v557
      %v573 = vpack.c.b16 %v560, %v559
      %v574 = vpack.c.b16 %v562, %v561
      %v575 = vpack.c.b16 %v564, %v563
      %v576 = vpack.c.b16 %v566, %v565
      %v577 = vpack.c.b16 %v568, %v567
      %v578 = vpack.c.b16 %v570, %v569
      %587 = vmatprep.subr.bf16.mxu0 0
      %588 = vmatpush1.bf16.msra.mxu0 %v571
      %589 = vmatprep.subr.bf16.mxu0 0
      %590 = vmatpush1.bf16.msra.mxu0 %v572
      %591 = vmatprep.subr.bf16.mxu0 0
      %592 = vmatpush1.bf16.msra.mxu0 %v573
      %593 = vmatprep.subr.bf16.mxu0 0
      %594 = vmatpush1.bf16.msra.mxu0 %v574
      %595 = vmatprep.subr.bf16.mxu0 0
      %596 = vmatpush1.bf16.msra.mxu0 %v575
      %597 = vmatprep.subr.bf16.mxu0 0
      %598 = vmatpush1.bf16.msra.mxu0 %v576
      %599 = vmatprep.subr.bf16.mxu0 0
      %600 = vmatpush1.bf16.msra.mxu0 %v577
      %601 = vmatprep.subr.bf16.mxu0 0
      %602 = vmatpush1.bf16.msra.mxu0 %v578
      %603 = vmatprep.subr.bf16.mxu0 0
      %604 = vmatpush1.bf16.msra.mxu0 0
      %605 = vmatprep.subr.bf16.mxu0 0
      %606 = vmatpush1.bf16.msra.mxu0 0
      %607 = vmatprep.subr.bf16.mxu0 0
      %608 = vmatpush1.bf16.msra.mxu0 0
      %609 = vmatprep.subr.bf16.mxu0 0
      %610 = vmatpush1.bf16.msra.mxu0 0
      %611 = vmatprep.subr.bf16.mxu0 0
      %612 = vmatpush1.bf16.msra.mxu0 0
      %613 = vmatprep.subr.bf16.mxu0 0
      %614 = vmatpush1.bf16.msra.mxu0 0
      %615 = vmatprep.subr.bf16.mxu0 0
      %616 = vmatpush1.bf16.msra.mxu0 0
      %617 = vmatprep.subr.bf16.mxu0 0
      %618 = vmatpush1.bf16.msra.mxu0 0
      %619 = vmatprep.mubr.bf16.mxu0 0
      %620 = vmatmul.mubr.bf16.gmra.mrb[0].mxu0 %v515
      %v621 = vpop.f32.mrb[0].mxu0
      %v622 = vadd.f32 0.0, %v621
      %v623 = vpop.f32.mrb[0].mxu0
      %v624 = vpop.f32.mrb[0].mxu0
      %v625 = vadd.f32 0.0, %v624
      %v626 = vpop.f32.mrb[0].mxu0
      %627 = vmatprep.mubr.bf16.mxu0 0
      %628 = vmatmul.mubr.bf16.gmra.mrb[0].mxu0 %v516
      %v629 = vpop.f32.mrb[0].mxu0
      %v630 = vadd.f32 0.0, %v629
      %v631 = vpop.f32.mrb[0].mxu0
      %v632 = vpop.f32.mrb[0].mxu0
      %v633 = vadd.f32 0.0, %v632
      %v634 = vpop.f32.mrb[0].mxu0
      %635 = vmatprep.mubr.bf16.mxu0 0
      %636 = vmatmul.mubr.bf16.gmra.mrb[0].mxu0 %v517
      %v637 = vpop.f32.mrb[0].mxu0
      %v638 = vadd.f32 0.0, %v637
      %v639 = vpop.f32.mrb[0].mxu0
      %v640 = vpop.f32.mrb[0].mxu0
      %v641 = vadd.f32 0.0, %v640
      %v642 = vpop.f32.mrb[0].mxu0
      %643 = vmatprep.mubr.bf16.mxu0 0
      %644 = vmatmul.mubr.bf16.gmra.mrb[0].mxu0 %v518
      %v645 = vpop.f32.mrb[0].mxu0
      %v646 = vadd.f32 0.0, %v645
      %v647 = vpop.f32.mrb[0].mxu0
      %v648 = vpop.f32.mrb[0].mxu0
      %v649 = vadd.f32 0.0, %v648
      %v650 = vpop.f32.mrb[0].mxu0
      %651 = vmatprep.mubr.bf16.mxu0 0
      %652 = vmatmul.mubr.bf16.gmra.mrb[0].mxu0 %v519
      %v653 = vpop.f32.mrb[0].mxu0
      %v654 = vadd.f32 0.0, %v653
      %v655 = vpop.f32.mrb[0].mxu0
      %v656 = vpop.f32.mrb[0].mxu0
      %v657 = vadd.f32 0.0, %v656
      %v658 = vpop.f32.mrb[0].mxu0
      %659 = vmatprep.mubr.bf16.mxu0 0
      %660 = vmatmul.mubr.bf16.gmra.mrb[0].mxu0 %v520
      %v661 = vpop.f32.mrb[0].mxu0
      %v662 = vadd.f32 0.0, %v661
      %v663 = vpop.f32.mrb[0].mxu0
      %v664 = vpop.f32.mrb[0].mxu0
      %v665 = vadd.f32 0.0, %v664
      %v666 = vpop.f32.mrb[0].mxu0
      %667 = vmatprep.mubr.bf16.mxu0 0
      %668 = vmatmul.mubr.bf16.gmra.mrb[0].mxu0 %v521
      %v669 = vpop.f32.mrb[0].mxu0
      %v670 = vadd.f32 0.0, %v669
      %v671 = vpop.f32.mrb[0].mxu0
      %v672 = vpop.f32.mrb[0].mxu0
      %v673 = vadd.f32 0.0, %v672
      %v674 = vpop.f32.mrb[0].mxu0
      %675 = vmatprep.mubr.bf16.mxu0 0
      %676 = vmatmul.mubr.bf16.gmra.mrb[0].mxu0 %v522
      %v677 = vpop.f32.mrb[0].mxu0
      %v678 = vadd.f32 0.0, %v677
      %v679 = vpop.f32.mrb[0].mxu0
      %v680 = vpop.f32.mrb[0].mxu0
      %v681 = vadd.f32 0.0, %v680
      %v682 = vpop.f32.mrb[0].mxu0
      %683 = vmatprep.mubr.bf16.mxu0 0
      %684 = vmatmul.mubr.bf16.gmra.mrb[0].mxu0 %v523
      %v685 = vpop.f32.mrb[0].mxu0
      %v686 = vadd.f32 0.0, %v685
      %v687 = vpop.f32.mrb[0].mxu0
      %v688 = vpop.f32.mrb[0].mxu0
      %v689 = vadd.f32 0.0, %v688
      %v690 = vpop.f32.mrb[0].mxu0
      %691 = vmatprep.mubr.bf16.mxu0 0
      %692 = vmatmul.mubr.bf16.gmra.mrb[0].mxu0 %v524
      %v693 = vpop.f32.mrb[0].mxu0
      %v694 = vadd.f32 0.0, %v693
      %v695 = vpop.f32.mrb[0].mxu0
      %v696 = vpop.f32.mrb[0].mxu0
      %v697 = vadd.f32 0.0, %v696
      %v698 = vpop.f32.mrb[0].mxu0
      %699 = vmatprep.mubr.bf16.mxu0 0
      %700 = vmatmul.mubr.bf16.gmra.mrb[0].mxu0 %v525
      %v701 = vpop.f32.mrb[0].mxu0
      %v702 = vadd.f32 0.0, %v701
      %v703 = vpop.f32.mrb[0].mxu0
      %v704 = vpop.f32.mrb[0].mxu0
      %v705 = vadd.f32 0.0, %v704
      %v706 = vpop.f32.mrb[0].mxu0
      %707 = vmatprep.mubr.bf16.mxu0 0
      %708 = vmatmul.mubr.bf16.gmra.mrb[0].mxu0 %v526
      %v709 = vpop.f32.mrb[0].mxu0
      %v710 = vadd.f32 0.0, %v709
      %v711 = vpop.f32.mrb[0].mxu0
      %v712 = vpop.f32.mrb[0].mxu0
      %v713 = vadd.f32 0.0, %v712
      %v714 = vpop.f32.mrb[0].mxu0
      %715 = vdwg.mxu0
      %v716 = vpack.c.bf16 %v625, %v622
      %v717 = vpack.c.bf16 %v633, %v630
      %v718 = vpack.c.bf16 %v641, %v638
      %v719 = vpack.c.bf16 %v649, %v646
      %v720 = vpack.c.bf16 %v657, %v654
      %v721 = vpack.c.bf16 %v665, %v662
      %v722 = vpack.c.bf16 %v673, %v670
      %v723 = vpack.c.bf16 %v681, %v678
      %v724 = vpack.c.bf16 %v689, %v686
      %v725 = vpack.c.bf16 %v697, %v694
      %v726 = vpack.c.bf16 %v705, %v702
      %v727 = vpack.c.bf16 %v713, %v710
      %v740 = vunpack.c.l.b16 %v716
      %v741 = vunpack.c.h.b16 %v716
      %v742 = vunpack.c.l.b16 %v717
      %v743 = vunpack.c.h.b16 %v717
      %v744 = vunpack.c.l.b16 %v718
      %v745 = vunpack.c.h.b16 %v718
      %v746 = vunpack.c.l.b16 %v719
      %v747 = vunpack.c.h.b16 %v719
      %v748 = vunpack.c.l.b16 %v720
      %v749 = vunpack.c.h.b16 %v720
      %v750 = vunpack.c.l.b16 %v721
      %v751 = vunpack.c.h.b16 %v721
      %v752 = vunpack.c.l.b16 %v722
      %v753 = vunpack.c.h.b16 %v722
      %v754 = vunpack.c.l.b16 %v723
      %v755 = vunpack.c.h.b16 %v723
      %v756 = vunpack.c.l.b16 %v724
      %v757 = vunpack.c.h.b16 %v724
      %v758 = vunpack.c.l.b16 %v725
      %v759 = vunpack.c.h.b16 %v725
      %v760 = vunpack.c.l.b16 %v726
      %v761 = vunpack.c.h.b16 %v726
      %v762 = vunpack.c.l.b16 %v727
      %v763 = vunpack.c.h.b16 %v727
      %v764 = vpack.c.b16 %v740, %v740
      %v765 = vpack.c.b16 %v741, %v741
      %v766 = vpack.c.b16 %v742, %v742
      %v767 = vpack.c.b16 %v743, %v743
      %v768 = vpack.c.b16 %v744, %v744
      %v769 = vpack.c.b16 %v745, %v745
      %v770 = vpack.c.b16 %v746, %v746
      %v771 = vpack.c.b16 %v747, %v747
      %v772 = vpack.c.b16 %v748, %v748
      %v773 = vpack.c.b16 %v749, %v749
      %v774 = vpack.c.b16 %v750, %v750
      %v775 = vpack.c.b16 %v751, %v751
      %v776 = vpack.c.b16 %v752, %v752
      %v777 = vpack.c.b16 %v753, %v753
      %v778 = vpack.c.b16 %v754, %v754
      %v779 = vpack.c.b16 %v755, %v755
      %v780 = vpack.c.b16 %v756, %v756
      %v781 = vpack.c.b16 %v757, %v757
      %v782 = vpack.c.b16 %v758, %v758
      %v783 = vpack.c.b16 %v759, %v759
      %v784 = vpack.c.b16 %v760, %v760
      %v785 = vpack.c.b16 %v761, %v761
      %v786 = vpack.c.b16 %v762, %v762
      %v787 = vpack.c.b16 %v763, %v763
      %v788 = vld [vmem:[%s2] sm:$0xf]
      %v789 = vld [vmem:[%s2 + $0x4] sm:$0xf]
      %v790 = vld [vmem:[%s2 + $0x8] sm:$0xf]
      %v791 = vld [vmem:[%s2 + $0xc] sm:$0xf]
      %vm792 = vsmask.f32 3328
      %vm793 = vsmask.f32 7440
      %vm794 = vmor %vm792, %vm793
      %v796 = vshrl.u32 %v764, 16
      %v798 = vrot.slane %v796, 4
      %v799 = vshll.u32 %v764, 16
      %v801 = vrot.slane %v799, 5
      %v802 = vor.u32 %v798, %v801
      %v803 = vrot.slane %v802, 4
      %v805 = vshll.u32 %v765, 16
      %v807 = vrot.slane %v805, 5
      %v808 = vsel %vm794, %v803, %v807
      %v809 = vshrl.u32 %v765, 16
      %v811 = vrot.slane %v809, 4
      %v812 = vor.u32 %v811, %v807
      %v813 = vrot.slane %v812, 4
      %v815 = vshll.u32 %v766, 16
      %v817 = vrot.slane %v815, 5
      %v818 = vsel %vm794, %v813, %v817
      %v820 = vshrl.u32 %v767, 16
      %v822 = vrot.slane %v820, 4
      %v823 = vshll.u32 %v767, 16
      %v825 = vrot.slane %v823, 5
      %v826 = vor.u32 %v822, %v825
      %v827 = vrot.slane %v826, 4
      %v829 = vshll.u32 %v768, 16
      %v831 = vrot.slane %v829, 5
      %v832 = vsel %vm794, %v827, %v831
      %v833 = vshrl.u32 %v768, 16
      %v835 = vrot.slane %v833, 4
      %v836 = vor.u32 %v835, %v831
      %v837 = vrot.slane %v836, 4
      %v839 = vshll.u32 %v769, 16
      %v841 = vrot.slane %v839, 5
      %v842 = vsel %vm794, %v837, %v841
      %v844 = vshrl.u32 %v770, 16
      %v846 = vrot.slane %v844, 4
      %v847 = vshll.u32 %v770, 16
      %v849 = vrot.slane %v847, 5
      %v850 = vor.u32 %v846, %v849
      %v851 = vrot.slane %v850, 4
      %v853 = vshll.u32 %v771, 16
      %v855 = vrot.slane %v853, 5
      %v856 = vsel %vm794, %v851, %v855
      %v857 = vshrl.u32 %v771, 16
      %v859 = vrot.slane %v857, 4
      %v860 = vor.u32 %v859, %v855
      %v861 = vrot.slane %v860, 4
      %v863 = vshll.u32 %v772, 16
      %v865 = vrot.slane %v863, 5
      %v866 = vsel %vm794, %v861, %v865
      %v868 = vshrl.u32 %v773, 16
      %v870 = vrot.slane %v868, 4
      %v871 = vshll.u32 %v773, 16
      %v873 = vrot.slane %v871, 5
      %v874 = vor.u32 %v870, %v873
      %v875 = vrot.slane %v874, 4
      %v877 = vshll.u32 %v774, 16
      %v879 = vrot.slane %v877, 5
      %v880 = vsel %vm794, %v875, %v879
      %v881 = vshrl.u32 %v774, 16
      %v883 = vrot.slane %v881, 4
      %v884 = vor.u32 %v883, %v879
      %v885 = vrot.slane %v884, 4
      %v887 = vshll.u32 %v775, 16
      %v889 = vrot.slane %v887, 5
      %v890 = vsel %vm794, %v885, %v889
      %v892 = vshrl.u32 %v776, 16
      %v894 = vrot.slane %v892, 4
      %v895 = vshll.u32 %v776, 16
      %v897 = vrot.slane %v895, 5
      %v898 = vor.u32 %v894, %v897
      %v899 = vrot.slane %v898, 4
      %v901 = vshll.u32 %v777, 16
      %v903 = vrot.slane %v901, 5
      %v904 = vsel %vm794, %v899, %v903
      %v905 = vshrl.u32 %v777, 16
      %v907 = vrot.slane %v905, 4
      %v908 = vor.u32 %v907, %v903
      %v909 = vrot.slane %v908, 4
      %v911 = vshll.u32 %v778, 16
      %v913 = vrot.slane %v911, 5
      %v914 = vsel %vm794, %v909, %v913
      %v916 = vshrl.u32 %v779, 16
      %v918 = vrot.slane %v916, 4
      %v919 = vshll.u32 %v779, 16
      %v921 = vrot.slane %v919, 5
      %v922 = vor.u32 %v918, %v921
      %v923 = vrot.slane %v922, 4
      %v925 = vshll.u32 %v780, 16
      %v927 = vrot.slane %v925, 5
      %v928 = vsel %vm794, %v923, %v927
      %v929 = vshrl.u32 %v780, 16
      %v931 = vrot.slane %v929, 4
      %v932 = vor.u32 %v931, %v927
      %v933 = vrot.slane %v932, 4
      %v935 = vshll.u32 %v781, 16
      %v937 = vrot.slane %v935, 5
      %v938 = vsel %vm794, %v933, %v937
      %v940 = vshrl.u32 %v782, 16
      %v942 = vrot.slane %v940, 4
      %v943 = vshll.u32 %v782, 16
      %v945 = vrot.slane %v943, 5
      %v946 = vor.u32 %v942, %v945
      %v947 = vrot.slane %v946, 4
      %v949 = vshll.u32 %v783, 16
      %v951 = vrot.slane %v949, 5
      %v952 = vsel %vm794, %v947, %v951
      %v953 = vshrl.u32 %v783, 16
      %v955 = vrot.slane %v953, 4
      %v956 = vor.u32 %v955, %v951
      %v957 = vrot.slane %v956, 4
      %v959 = vshll.u32 %v784, 16
      %v961 = vrot.slane %v959, 5
      %v962 = vsel %vm794, %v957, %v961
      %v964 = vshrl.u32 %v785, 16
      %v966 = vrot.slane %v964, 4
      %v967 = vshll.u32 %v785, 16
      %v969 = vrot.slane %v967, 5
      %v970 = vor.u32 %v966, %v969
      %v971 = vrot.slane %v970, 4
      %v973 = vshll.u32 %v786, 16
      %v975 = vrot.slane %v973, 5
      %v976 = vsel %vm794, %v971, %v975
      %v977 = vshrl.u32 %v786, 16
      %v979 = vrot.slane %v977, 4
      %v980 = vor.u32 %v979, %v975
      %v981 = vrot.slane %v980, 4
      %v983 = vshll.u32 %v787, 16
      %v985 = vrot.slane %v983, 5
      %v986 = vsel %vm794, %v981, %v985
      %s987 = scalar_lea.vmem %s2, 16
      %v988 = vld [vmem:[%s987] sm:$0xf]
      %v989 = vld [vmem:[%s987 + $0x4] sm:$0xf]
      %v990 = vld [vmem:[%s987 + $0x8] sm:$0xf]
      %v991 = vld [vmem:[%s987 + $0xc] sm:$0xf]
      %v992 = vunpack.c.l.b16 %v808
      %v993 = vunpack.c.l.b16 %v818
      %v994 = vunpack.c.l.b16 %v832
      %v995 = vunpack.c.l.b16 %v842
      %v996 = vunpack.c.l.b16 %v856
      %v997 = vunpack.c.l.b16 %v866
      %v998 = vunpack.c.l.b16 %v880
      %v999 = vunpack.c.l.b16 %v890
      %v1000 = vunpack.c.l.b16 %v904
      %v1001 = vunpack.c.l.b16 %v914
      %v1002 = vunpack.c.l.b16 %v928
      %v1003 = vunpack.c.l.b16 %v938
      %v1004 = vunpack.c.l.b16 %v952
      %v1005 = vunpack.c.l.b16 %v962
      %v1006 = vunpack.c.l.b16 %v976
      %v1007 = vunpack.c.l.b16 %v986
      %v1008 = vpack.c.b16 %v993, %v992
      %v1009 = vpack.c.b16 %v995, %v994
      %v1010 = vpack.c.b16 %v997, %v996
      %v1011 = vpack.c.b16 %v999, %v998
      %v1012 = vpack.c.b16 %v1001, %v1000
      %v1013 = vpack.c.b16 %v1003, %v1002
      %v1014 = vpack.c.b16 %v1005, %v1004
      %v1015 = vpack.c.b16 %v1007, %v1006
      %v1020 = vunpack.c.l.b16 %v988
      %v1021 = vunpack.c.l.b16 %v989
      %v1022 = vunpack.c.l.b16 %v990
      %v1023 = vunpack.c.l.b16 %v991
      %v1024 = vpack.c.b16 %v1021, %v1020
      %v1025 = vpack.c.b16 %v1023, %v1022
      %vm1028 = vcmask 261120
      %v1030 = vsel %vm1028, %v1008, 0
      %v1033 = vsel %vm1028, %v1009, 0
      %v1036 = vsel %vm1028, %v1010, 0
      %v1039 = vsel %vm1028, %v1011, 0
      %v1042 = vsel %vm1028, %v1012, 0
      %v1045 = vsel %vm1028, %v1013, 0
      %v1048 = vsel %vm1028, %v1014, 0
      %v1051 = vsel %vm1028, %v1015, 0
      %1053 = vmatprep.subr.bf16.mxu0 0
      %1054 = vmatpush1.bf16.msra.mxu0 %v1024
      %1055 = vmatprep.subr.bf16.mxu0 0
      %1056 = vmatpush1.bf16.msra.mxu0 %v1025
      %1057 = vmatprep.subr.bf16.mxu0 0
      %1058 = vmatpush1.bf16.msra.mxu0 0
      %1059 = vmatprep.subr.bf16.mxu0 0
      %1060 = vmatpush1.bf16.msra.mxu0 0
      %1061 = vmatprep.subr.bf16.mxu0 0
      %1062 = vmatpush1.bf16.msra.mxu0 0
      %1063 = vmatprep.subr.bf16.mxu0 0
      %1064 = vmatpush1.bf16.msra.mxu0 0
      %1065 = vmatprep.subr.bf16.mxu0 0
      %1066 = vmatpush1.bf16.msra.mxu0 0
      %1067 = vmatprep.subr.bf16.mxu0 0
      %1068 = vmatpush1.bf16.msra.mxu0 0
      %1069 = vmatprep.subr.bf16.mxu0 0
      %1070 = vmatpush1.bf16.msra.mxu0 0
      %1071 = vmatprep.subr.bf16.mxu0 0
      %1072 = vmatpush1.bf16.msra.mxu0 0
      %1073 = vmatprep.subr.bf16.mxu0 0
      %1074 = vmatpush1.bf16.msra.mxu0 0
      %1075 = vmatprep.subr.bf16.mxu0 0
      %1076 = vmatpush1.bf16.msra.mxu0 0
      %1077 = vmatprep.subr.bf16.mxu0 0
      %1078 = vmatpush1.bf16.msra.mxu0 0
      %1079 = vmatprep.subr.bf16.mxu0 0
      %1080 = vmatpush1.bf16.msra.mxu0 0
      %1081 = vmatprep.subr.bf16.mxu0 0
      %1082 = vmatpush1.bf16.msra.mxu0 0
      %1083 = vmatprep.subr.bf16.mxu0 0
      %1084 = vmatpush1.bf16.msra.mxu0 0
      %1085 = vmatprep.mubr.bf16.mxu0 0
      %1086 = vmatmul.mubr.bf16.gmra.mrb[0].mxu0 %v1030
      %v1087 = vpop.f32.mrb[0].mxu0
      %v1088 = vadd.f32 0.0, %v1087
      %v1089 = vpop.f32.mrb[0].mxu0
      %v1090 = vpop.f32.mrb[0].mxu0
      %v1091 = vadd.f32 0.0, %v1090
      %v1092 = vpop.f32.mrb[0].mxu0
      %1093 = vmatprep.mubr.bf16.mxu0 0
      %1094 = vmatmul.mubr.bf16.gmra.mrb[0].mxu0 %v1033
      %v1095 = vpop.f32.mrb[0].mxu0
      %v1096 = vadd.f32 0.0, %v1095
      %v1097 = vpop.f32.mrb[0].mxu0
      %v1098 = vpop.f32.mrb[0].mxu0
      %v1099 = vadd.f32 0.0, %v1098
      %v1100 = vpop.f32.mrb[0].mxu0
      %1101 = vmatprep.mubr.bf16.mxu0 0
      %1102 = vmatmul.mubr.bf16.gmra.mrb[0].mxu0 %v1036
      %v1103 = vpop.f32.mrb[0].mxu0
      %v1104 = vadd.f32 0.0, %v1103
      %v1105 = vpop.f32.mrb[0].mxu0
      %v1106 = vpop.f32.mrb[0].mxu0
      %v1107 = vadd.f32 0.0, %v1106
      %v1108 = vpop.f32.mrb[0].mxu0
      %1109 = vmatprep.mubr.bf16.mxu0 0
      %1110 = vmatmul.mubr.bf16.gmra.mrb[0].mxu0 %v1039
      %v1111 = vpop.f32.mrb[0].mxu0
      %v1112 = vadd.f32 0.0, %v1111
      %v1113 = vpop.f32.mrb[0].mxu0
      %v1114 = vpop.f32.mrb[0].mxu0
      %v1115 = vadd.f32 0.0, %v1114
      %v1116 = vpop.f32.mrb[0].mxu0
      %1117 = vmatprep.mubr.bf16.mxu0 0
      %1118 = vmatmul.mubr.bf16.gmra.mrb[0].mxu0 %v1042
      %v1119 = vpop.f32.mrb[0].mxu0
      %v1120 = vadd.f32 0.0, %v1119
      %v1121 = vpop.f32.mrb[0].mxu0
      %v1122 = vpop.f32.mrb[0].mxu0
      %v1123 = vadd.f32 0.0, %v1122
      %v1124 = vpop.f32.mrb[0].mxu0
      %1125 = vmatprep.mubr.bf16.mxu0 0
      %1126 = vmatmul.mubr.bf16.gmra.mrb[0].mxu0 %v1045
      %v1127 = vpop.f32.mrb[0].mxu0
      %v1128 = vadd.f32 0.0, %v1127
      %v1129 = vpop.f32.mrb[0].mxu0
      %v1130 = vpop.f32.mrb[0].mxu0
      %v1131 = vadd.f32 0.0, %v1130
      %v1132 = vpop.f32.mrb[0].mxu0
      %1133 = vmatprep.mubr.bf16.mxu0 0
      %1134 = vmatmul.mubr.bf16.gmra.mrb[0].mxu0 %v1048
      %v1135 = vpop.f32.mrb[0].mxu0
      %v1136 = vadd.f32 0.0, %v1135
      %v1137 = vpop.f32.mrb[0].mxu0
      %v1138 = vpop.f32.mrb[0].mxu0
      %v1139 = vadd.f32 0.0, %v1138
      %v1140 = vpop.f32.mrb[0].mxu0
      %1141 = vmatprep.mubr.bf16.mxu0 0
      %1142 = vmatmul.mubr.bf16.gmra.mrb[0].mxu0 %v1051
      %v1143 = vpop.f32.mrb[0].mxu0
      %v1144 = vadd.f32 0.0, %v1143
      %v1145 = vpop.f32.mrb[0].mxu0
      %v1146 = vpop.f32.mrb[0].mxu0
      %v1147 = vadd.f32 0.0, %v1146
      %v1148 = vpop.f32.mrb[0].mxu0
      %1149 = vdwg.mxu0
      %v1150 = vpack.c.b16 %v741, %v740
      %v1151 = vpack.c.b16 %v744, %v743
      %v1152 = vpack.c.b16 %v747, %v746
      %v1153 = vpack.c.b16 %v750, %v749
      %v1154 = vpack.c.b16 %v753, %v752
      %v1155 = vpack.c.b16 %v756, %v755
      %v1156 = vpack.c.b16 %v759, %v758
      %v1157 = vpack.c.b16 %v762, %v761
      %v1162 = vunpack.c.l.b16 %v788
      %v1163 = vunpack.c.l.b16 %v789
      %v1164 = vunpack.c.l.b16 %v790
      %v1165 = vunpack.c.l.b16 %v791
      %v1166 = vpack.c.b16 %v1163, %v1162
      %v1167 = vpack.c.b16 %v1165, %v1164
      %v1171 = vsel %vm1028, %v1150, 0
      %v1174 = vsel %vm1028, %v1151, 0
      %v1177 = vsel %vm1028, %v1152, 0
      %v1180 = vsel %vm1028, %v1153, 0
      %v1183 = vsel %vm1028, %v1154, 0
      %v1186 = vsel %vm1028, %v1155, 0
      %v1189 = vsel %vm1028, %v1156, 0
      %v1192 = vsel %vm1028, %v1157, 0
      %1194 = vmatprep.subr.bf16.mxu0 0
      %1195 = vmatpush1.bf16.msra.mxu0 %v1166
      %1196 = vmatprep.subr.bf16.mxu0 0
      %1197 = vmatpush1.bf16.msra.mxu0 %v1167
      %1198 = vmatprep.subr.bf16.mxu0 0
      %1199 = vmatpush1.bf16.msra.mxu0 0
      %1200 = vmatprep.subr.bf16.mxu0 0
      %1201 = vmatpush1.bf16.msra.mxu0 0
      %1202 = vmatprep.subr.bf16.mxu0 0
      %1203 = vmatpush1.bf16.msra.mxu0 0
      %1204 = vmatprep.subr.bf16.mxu0 0
      %1205 = vmatpush1.bf16.msra.mxu0 0
      %1206 = vmatprep.subr.bf16.mxu0 0
      %1207 = vmatpush1.bf16.msra.mxu0 0
      %1208 = vmatprep.subr.bf16.mxu0 0
      %1209 = vmatpush1.bf16.msra.mxu0 0
      %1210 = vmatprep.subr.bf16.mxu0 0
      %1211 = vmatpush1.bf16.msra.mxu0 0
      %1212 = vmatprep.subr.bf16.mxu0 0
      %1213 = vmatpush1.bf16.msra.mxu0 0
      %1214 = vmatprep.subr.bf16.mxu0 0
      %1215 = vmatpush1.bf16.msra.mxu0 0
      %1216 = vmatprep.subr.bf16.mxu0 0
      %1217 = vmatpush1.bf16.msra.mxu0 0
      %1218 = vmatprep.subr.bf16.mxu0 0
      %1219 = vmatpush1.bf16.msra.mxu0 0
      %1220 = vmatprep.subr.bf16.mxu0 0
      %1221 = vmatpush1.bf16.msra.mxu0 0
      %1222 = vmatprep.subr.bf16.mxu0 0
      %1223 = vmatpush1.bf16.msra.mxu0 0
      %1224 = vmatprep.subr.bf16.mxu0 0
      %1225 = vmatpush1.bf16.msra.mxu0 0
      %1226 = vmatprep.mubr.bf16.mxu0 0
      %1227 = vmatmul.mubr.bf16.gmra.mrb[0].mxu0 %v1171
      %v1228 = vpop.f32.mrb[0].mxu0
      %v1229 = vadd.f32 %v1088, %v1228
      %v1230 = vpop.f32.mrb[0].mxu0
      %v1231 = vpop.f32.mrb[0].mxu0
      %v1232 = vadd.f32 %v1091, %v1231
      %v1233 = vpop.f32.mrb[0].mxu0
      %1234 = vmatprep.mubr.bf16.mxu0 0
      %1235 = vmatmul.mubr.bf16.gmra.mrb[0].mxu0 %v1174
      %v1236 = vpop.f32.mrb[0].mxu0
      %v1237 = vadd.f32 %v1096, %v1236
      %v1238 = vpop.f32.mrb[0].mxu0
      %v1239 = vpop.f32.mrb[0].mxu0
      %v1240 = vadd.f32 %v1099, %v1239
      %v1241 = vpop.f32.mrb[0].mxu0
      %1242 = vmatprep.mubr.bf16.mxu0 0
      %1243 = vmatmul.mubr.bf16.gmra.mrb[0].mxu0 %v1177
      %v1244 = vpop.f32.mrb[0].mxu0
      %v1245 = vadd.f32 %v1104, %v1244
      %v1246 = vpop.f32.mrb[0].mxu0
      %v1247 = vpop.f32.mrb[0].mxu0
      %v1248 = vadd.f32 %v1107, %v1247
      %v1249 = vpop.f32.mrb[0].mxu0
      %1250 = vmatprep.mubr.bf16.mxu0 0
      %1251 = vmatmul.mubr.bf16.gmra.mrb[0].mxu0 %v1180
      %v1252 = vpop.f32.mrb[0].mxu0
      %v1253 = vadd.f32 %v1112, %v1252
      %v1254 = vpop.f32.mrb[0].mxu0
      %v1255 = vpop.f32.mrb[0].mxu0
      %v1256 = vadd.f32 %v1115, %v1255
      %v1257 = vpop.f32.mrb[0].mxu0
      %1258 = vmatprep.mubr.bf16.mxu0 0
      %1259 = vmatmul.mubr.bf16.gmra.mrb[0].mxu0 %v1183
      %v1260 = vpop.f32.mrb[0].mxu0
      %v1261 = vadd.f32 %v1120, %v1260
      %v1262 = vpop.f32.mrb[0].mxu0
      %v1263 = vpop.f32.mrb[0].mxu0
      %v1264 = vadd.f32 %v1123, %v1263
      %v1265 = vpop.f32.mrb[0].mxu0
      %1266 = vmatprep.mubr.bf16.mxu0 0
      %1267 = vmatmul.mubr.bf16.gmra.mrb[0].mxu0 %v1186
      %v1268 = vpop.f32.mrb[0].mxu0
      %v1269 = vadd.f32 %v1128, %v1268
      %v1270 = vpop.f32.mrb[0].mxu0
      %v1271 = vpop.f32.mrb[0].mxu0
      %v1272 = vadd.f32 %v1131, %v1271
      %v1273 = vpop.f32.mrb[0].mxu0
      %1274 = vmatprep.mubr.bf16.mxu0 0
      %1275 = vmatmul.mubr.bf16.gmra.mrb[0].mxu0 %v1189
      %v1276 = vpop.f32.mrb[0].mxu0
      %v1277 = vadd.f32 %v1136, %v1276
      %v1278 = vpop.f32.mrb[0].mxu0
      %v1279 = vpop.f32.mrb[0].mxu0
      %v1280 = vadd.f32 %v1139, %v1279
      %v1281 = vpop.f32.mrb[0].mxu0
      %1282 = vmatprep.mubr.bf16.mxu0 0
      %1283 = vmatmul.mubr.bf16.gmra.mrb[0].mxu0 %v1192
      %v1284 = vpop.f32.mrb[0].mxu0
      %v1285 = vadd.f32 %v1144, %v1284
      %v1286 = vpop.f32.mrb[0].mxu0
      %v1287 = vpop.f32.mrb[0].mxu0
      %v1288 = vadd.f32 %v1147, %v1287
      %v1289 = vpop.f32.mrb[0].mxu0
      %1290 = vdwg.mxu0
      %vm1291 = vcmask 1042432
      %vm1292 = vcmask 1046532
      %vm1293 = vmor %vm1291, %vm1292
      %v1294 = vrot.slane %v764, 5
      %v1295 = vrot.slane %v1294, 4
      %v1296 = vrot.slane %v765, 5
      %v1297 = vsel %vm1293, %v1295, %v1296
      %v1298 = vrot.slane %v1296, 4
      %v1299 = vrot.slane %v766, 5
      %v1300 = vsel %vm1293, %v1298, %v1299
      %v1301 = vrot.slane %v767, 5
      %v1302 = vrot.slane %v1301, 4
      %v1303 = vrot.slane %v768, 5
      %v1304 = vsel %vm1293, %v1302, %v1303
      %v1305 = vrot.slane %v1303, 4
      %v1306 = vrot.slane %v769, 5
      %v1307 = vsel %vm1293, %v1305, %v1306
      %v1308 = vrot.slane %v770, 5
      %v1309 = vrot.slane %v1308, 4
      %v1310 = vrot.slane %v771, 5
      %v1311 = vsel %vm1293, %v1309, %v1310
      %v1312 = vrot.slane %v1310, 4
      %v1313 = vrot.slane %v772, 5
      %v1314 = vsel %vm1293, %v1312, %v1313
      %v1315 = vrot.slane %v773, 5
      %v1316 = vrot.slane %v1315, 4
      %v1317 = vrot.slane %v774, 5
      %v1318 = vsel %vm1293, %v1316, %v1317
      %v1319 = vrot.slane %v1317, 4
      %v1320 = vrot.slane %v775, 5
      %v1321 = vsel %vm1293, %v1319, %v1320
      %v1322 = vrot.slane %v776, 5
      %v1323 = vrot.slane %v1322, 4
      %v1324 = vrot.slane %v777, 5
      %v1325 = vsel %vm1293, %v1323, %v1324
      %v1326 = vrot.slane %v1324, 4
      %v1327 = vrot.slane %v778, 5
      %v1328 = vsel %vm1293, %v1326, %v1327
      %v1329 = vrot.slane %v779, 5
      %v1330 = vrot.slane %v1329, 4
      %v1331 = vrot.slane %v780, 5
      %v1332 = vsel %vm1293, %v1330, %v1331
      %v1333 = vrot.slane %v1331, 4
      %v1334 = vrot.slane %v781, 5
      %v1335 = vsel %vm1293, %v1333, %v1334
      %v1336 = vrot.slane %v782, 5
      %v1337 = vrot.slane %v1336, 4
      %v1338 = vrot.slane %v783, 5
      %v1339 = vsel %vm1293, %v1337, %v1338
      %v1340 = vrot.slane %v1338, 4
      %v1341 = vrot.slane %v784, 5
      %v1342 = vsel %vm1293, %v1340, %v1341
      %v1343 = vrot.slane %v785, 5
      %v1344 = vrot.slane %v1343, 4
      %v1345 = vrot.slane %v786, 5
      %v1346 = vsel %vm1293, %v1344, %v1345
      %v1347 = vrot.slane %v1345, 4
      %v1348 = vrot.slane %v787, 5
      %v1349 = vsel %vm1293, %v1347, %v1348
      %s1350 = scalar_lea.vmem %s2, 32
      %v1351 = vld [vmem:[%s1350] sm:$0xf]
      %v1352 = vld [vmem:[%s1350 + $0x4] sm:$0xf]
      %v1353 = vld [vmem:[%s1350 + $0x8] sm:$0xf]
      %v1354 = vld [vmem:[%s1350 + $0xc] sm:$0xf]
      %v1355 = vunpack.c.l.b16 %v1297
      %v1356 = vunpack.c.l.b16 %v1300
      %v1357 = vunpack.c.l.b16 %v1304
      %v1358 = vunpack.c.l.b16 %v1307
      %v1359 = vunpack.c.l.b16 %v1311
      %v1360 = vunpack.c.l.b16 %v1314
      %v1361 = vunpack.c.l.b16 %v1318
      %v1362 = vunpack.c.l.b16 %v1321
      %v1363 = vunpack.c.l.b16 %v1325
      %v1364 = vunpack.c.l.b16 %v1328
      %v1365 = vunpack.c.l.b16 %v1332
      %v1366 = vunpack.c.l.b16 %v1335
      %v1367 = vunpack.c.l.b16 %v1339
      %v1368 = vunpack.c.l.b16 %v1342
      %v1369 = vunpack.c.l.b16 %v1346
      %v1370 = vunpack.c.l.b16 %v1349
      %v1371 = vpack.c.b16 %v1356, %v1355
      %v1372 = vpack.c.b16 %v1358, %v1357
      %v1373 = vpack.c.b16 %v1360, %v1359
      %v1374 = vpack.c.b16 %v1362, %v1361
      %v1375 = vpack.c.b16 %v1364, %v1363
      %v1376 = vpack.c.b16 %v1366, %v1365
      %v1377 = vpack.c.b16 %v1368, %v1367
      %v1378 = vpack.c.b16 %v1370, %v1369
      %v1383 = vunpack.c.l.b16 %v1351
      %v1384 = vunpack.c.l.b16 %v1352
      %v1385 = vunpack.c.l.b16 %v1353
      %v1386 = vunpack.c.l.b16 %v1354
      %v1387 = vpack.c.b16 %v1384, %v1383
      %v1388 = vpack.c.b16 %v1386, %v1385
      %v1392 = vsel %vm1028, %v1371, 0
      %v1395 = vsel %vm1028, %v1372, 0
      %v1398 = vsel %vm1028, %v1373, 0
      %v1401 = vsel %vm1028, %v1374, 0
      %v1404 = vsel %vm1028, %v1375, 0
      %v1407 = vsel %vm1028, %v1376, 0
      %v1410 = vsel %vm1028, %v1377, 0
      %v1413 = vsel %vm1028, %v1378, 0
      %1415 = vmatprep.subr.bf16.mxu0 0
      %1416 = vmatpush1.bf16.msra.mxu0 %v1387
      %1417 = vmatprep.subr.bf16.mxu0 0
      %1418 = vmatpush1.bf16.msra.mxu0 %v1388
      %1419 = vmatprep.subr.bf16.mxu0 0
      %1420 = vmatpush1.bf16.msra.mxu0 0
      %1421 = vmatprep.subr.bf16.mxu0 0
      %1422 = vmatpush1.bf16.msra.mxu0 0
      %1423 = vmatprep.subr.bf16.mxu0 0
      %1424 = vmatpush1.bf16.msra.mxu0 0
      %1425 = vmatprep.subr.bf16.mxu0 0
      %1426 = vmatpush1.bf16.msra.mxu0 0
      %1427 = vmatprep.subr.bf16.mxu0 0
      %1428 = vmatpush1.bf16.msra.mxu0 0
      %1429 = vmatprep.subr.bf16.mxu0 0
      %1430 = vmatpush1.bf16.msra.mxu0 0
      %1431 = vmatprep.subr.bf16.mxu0 0
      %1432 = vmatpush1.bf16.msra.mxu0 0
      %1433 = vmatprep.subr.bf16.mxu0 0
      %1434 = vmatpush1.bf16.msra.mxu0 0
      %1435 = vmatprep.subr.bf16.mxu0 0
      %1436 = vmatpush1.bf16.msra.mxu0 0
      %1437 = vmatprep.subr.bf16.mxu0 0
      %1438 = vmatpush1.bf16.msra.mxu0 0
      %1439 = vmatprep.subr.bf16.mxu0 0
      %1440 = vmatpush1.bf16.msra.mxu0 0
      %1441 = vmatprep.subr.bf16.mxu0 0
      %1442 = vmatpush1.bf16.msra.mxu0 0
      %1443 = vmatprep.subr.bf16.mxu0 0
      %1444 = vmatpush1.bf16.msra.mxu0 0
      %1445 = vmatprep.subr.bf16.mxu0 0
      %1446 = vmatpush1.bf16.msra.mxu0 0
      %1447 = vmatprep.mubr.bf16.mxu0 0
      %1448 = vmatmul.mubr.bf16.gmra.mrb[0].mxu0 %v1392
      %v1449 = vpop.f32.mrb[0].mxu0
      %v1450 = vadd.f32 0.0, %v1449
      %v1451 = vpop.f32.mrb[0].mxu0
      %v1452 = vpop.f32.mrb[0].mxu0
      %v1453 = vadd.f32 0.0, %v1452
      %v1454 = vpop.f32.mrb[0].mxu0
      %1455 = vmatprep.mubr.bf16.mxu0 0
      %1456 = vmatmul.mubr.bf16.gmra.mrb[0].mxu0 %v1395
      %v1457 = vpop.f32.mrb[0].mxu0
      %v1458 = vadd.f32 0.0, %v1457
      %v1459 = vpop.f32.mrb[0].mxu0
      %v1460 = vpop.f32.mrb[0].mxu0
      %v1461 = vadd.f32 0.0, %v1460
      %v1462 = vpop.f32.mrb[0].mxu0
      %1463 = vmatprep.mubr.bf16.mxu0 0
      %1464 = vmatmul.mubr.bf16.gmra.mrb[0].mxu0 %v1398
      %v1465 = vpop.f32.mrb[0].mxu0
      %v1466 = vadd.f32 0.0, %v1465
      %v1467 = vpop.f32.mrb[0].mxu0
      %v1468 = vpop.f32.mrb[0].mxu0
      %v1469 = vadd.f32 0.0, %v1468
      %v1470 = vpop.f32.mrb[0].mxu0
      %1471 = vmatprep.mubr.bf16.mxu0 0
      %1472 = vmatmul.mubr.bf16.gmra.mrb[0].mxu0 %v1401
      %v1473 = vpop.f32.mrb[0].mxu0
      %v1474 = vadd.f32 0.0, %v1473
      %v1475 = vpop.f32.mrb[0].mxu0
      %v1476 = vpop.f32.mrb[0].mxu0
      %v1477 = vadd.f32 0.0, %v1476
      %v1478 = vpop.f32.mrb[0].mxu0
      %1479 = vmatprep.mubr.bf16.mxu0 0
      %1480 = vmatmul.mubr.bf16.gmra.mrb[0].mxu0 %v1404
      %v1481 = vpop.f32.mrb[0].mxu0
      %v1482 = vadd.f32 0.0, %v1481
      %v1483 = vpop.f32.mrb[0].mxu0
      %v1484 = vpop.f32.mrb[0].mxu0
      %v1485 = vadd.f32 0.0, %v1484
      %v1486 = vpop.f32.mrb[0].mxu0
      %1487 = vmatprep.mubr.bf16.mxu0 0
      %1488 = vmatmul.mubr.bf16.gmra.mrb[0].mxu0 %v1407
      %v1489 = vpop.f32.mrb[0].mxu0
      %v1490 = vadd.f32 0.0, %v1489
      %v1491 = vpop.f32.mrb[0].mxu0
      %v1492 = vpop.f32.mrb[0].mxu0
      %v1493 = vadd.f32 0.0, %v1492
      %v1494 = vpop.f32.mrb[0].mxu0
      %1495 = vmatprep.mubr.bf16.mxu0 0
      %1496 = vmatmul.mubr.bf16.gmra.mrb[0].mxu0 %v1410
      %v1497 = vpop.f32.mrb[0].mxu0
      %v1498 = vadd.f32 0.0, %v1497
      %v1499 = vpop.f32.mrb[0].mxu0
      %v1500 = vpop.f32.mrb[0].mxu0
      %v1501 = vadd.f32 0.0, %v1500
      %v1502 = vpop.f32.mrb[0].mxu0
      %1503 = vmatprep.mubr.bf16.mxu0 0
      %1504 = vmatmul.mubr.bf16.gmra.mrb[0].mxu0 %v1413
      %v1505 = vpop.f32.mrb[0].mxu0
      %v1506 = vadd.f32 0.0, %v1505
      %v1507 = vpop.f32.mrb[0].mxu0
      %v1508 = vpop.f32.mrb[0].mxu0
      %v1509 = vadd.f32 0.0, %v1508
      %v1510 = vpop.f32.mrb[0].mxu0
      %1511 = vdwg.mxu0
      %v1512 = vadd.f32 %v1229, %v1450
      %v1513 = vadd.f32 %v1232, %v1453
      %v1514 = vadd.f32 %v1237, %v1458
      %v1515 = vadd.f32 %v1240, %v1461
      %v1516 = vadd.f32 %v1245, %v1466
      %v1517 = vadd.f32 %v1248, %v1469
      %v1518 = vadd.f32 %v1253, %v1474
      %v1519 = vadd.f32 %v1256, %v1477
      %v1520 = vadd.f32 %v1261, %v1482
      %v1521 = vadd.f32 %v1264, %v1485
      %v1522 = vadd.f32 %v1269, %v1490
      %v1523 = vadd.f32 %v1272, %v1493
      %v1524 = vadd.f32 %v1277, %v1498
      %v1525 = vadd.f32 %v1280, %v1501
      %v1526 = vadd.f32 %v1285, %v1506
      %v1527 = vadd.f32 %v1288, %v1509
      %vm1528 = vsmask.f32 2304
      %vm1529 = vsmask.f32 6416
      %vm1530 = vmor %vm1528, %vm1529
      %v1531 = vrot.slane %v796, 5
      %v1532 = vrot.slane %v799, 6
      %v1533 = vor.u32 %v1531, %v1532
      %v1534 = vrot.slane %v1533, 4
      %v1535 = vrot.slane %v809, 5
      %v1536 = vrot.slane %v805, 6
      %v1537 = vor.u32 %v1535, %v1536
      %v1538 = vsel %vm1530, %v1534, %v1537
      %v1539 = vrot.slane %v1537, 4
      %v1540 = vshrl.u32 %v766, 16
      %v1542 = vrot.slane %v1540, 5
      %v1543 = vrot.slane %v815, 6
      %v1544 = vor.u32 %v1542, %v1543
      %v1545 = vsel %vm1530, %v1539, %v1544
      %v1546 = vrot.slane %v820, 5
      %v1547 = vrot.slane %v823, 6
      %v1548 = vor.u32 %v1546, %v1547
      %v1549 = vrot.slane %v1548, 4
      %v1550 = vrot.slane %v833, 5
      %v1551 = vrot.slane %v829, 6
      %v1552 = vor.u32 %v1550, %v1551
      %v1553 = vsel %vm1530, %v1549, %v1552
      %v1554 = vrot.slane %v1552, 4
      %v1555 = vshrl.u32 %v769, 16
      %v1557 = vrot.slane %v1555, 5
      %v1558 = vrot.slane %v839, 6
      %v1559 = vor.u32 %v1557, %v1558
      %v1560 = vsel %vm1530, %v1554, %v1559
      %v1561 = vrot.slane %v844, 5
      %v1562 = vrot.slane %v847, 6
      %v1563 = vor.u32 %v1561, %v1562
      %v1564 = vrot.slane %v1563, 4
      %v1565 = vrot.slane %v857, 5
      %v1566 = vrot.slane %v853, 6
      %v1567 = vor.u32 %v1565, %v1566
      %v1568 = vsel %vm1530, %v1564, %v1567
      %v1569 = vrot.slane %v1567, 4
      %v1570 = vshrl.u32 %v772, 16
      %v1572 = vrot.slane %v1570, 5
      %v1573 = vrot.slane %v863, 6
      %v1574 = vor.u32 %v1572, %v1573
      %v1575 = vsel %vm1530, %v1569, %v1574
      %v1576 = vrot.slane %v868, 5
      %v1577 = vrot.slane %v871, 6
      %v1578 = vor.u32 %v1576, %v1577
      %v1579 = vrot.slane %v1578, 4
      %v1580 = vrot.slane %v881, 5
      %v1581 = vrot.slane %v877, 6
      %v1582 = vor.u32 %v1580, %v1581
      %v1583 = vsel %vm1530, %v1579, %v1582
      %v1584 = vrot.slane %v1582, 4
      %v1585 = vshrl.u32 %v775, 16
      %v1587 = vrot.slane %v1585, 5
      %v1588 = vrot.slane %v887, 6
      %v1589 = vor.u32 %v1587, %v1588
      %v1590 = vsel %vm1530, %v1584, %v1589
      %v1591 = vrot.slane %v892, 5
      %v1592 = vrot.slane %v895, 6
      %v1593 = vor.u32 %v1591, %v1592
      %v1594 = vrot.slane %v1593, 4
      %v1595 = vrot.slane %v905, 5
      %v1596 = vrot.slane %v901, 6
      %v1597 = vor.u32 %v1595, %v1596
      %v1598 = vsel %vm1530, %v1594, %v1597
      %v1599 = vrot.slane %v1597, 4
      %v1600 = vshrl.u32 %v778, 16
      %v1602 = vrot.slane %v1600, 5
      %v1603 = vrot.slane %v911, 6
      %v1604 = vor.u32 %v1602, %v1603
      %v1605 = vsel %vm1530, %v1599, %v1604
      %v1606 = vrot.slane %v916, 5
      %v1607 = vrot.slane %v919, 6
      %v1608 = vor.u32 %v1606, %v1607
      %v1609 = vrot.slane %v1608, 4
      %v1610 = vrot.slane %v929, 5
      %v1611 = vrot.slane %v925, 6
      %v1612 = vor.u32 %v1610, %v1611
      %v1613 = vsel %vm1530, %v1609, %v1612
      %v1614 = vrot.slane %v1612, 4
      %v1615 = vshrl.u32 %v781, 16
      %v1617 = vrot.slane %v1615, 5
      %v1618 = vrot.slane %v935, 6
      %v1619 = vor.u32 %v1617, %v1618
      %v1620 = vsel %vm1530, %v1614, %v1619
      %v1621 = vrot.slane %v940, 5
      %v1622 = vrot.slane %v943, 6
      %v1623 = vor.u32 %v1621, %v1622
      %v1624 = vrot.slane %v1623, 4
      %v1625 = vrot.slane %v953, 5
      %v1626 = vrot.slane %v949, 6
      %v1627 = vor.u32 %v1625, %v1626
      %v1628 = vsel %vm1530, %v1624, %v1627
      %v1629 = vrot.slane %v1627, 4
      %v1630 = vshrl.u32 %v784, 16
      %v1632 = vrot.slane %v1630, 5
      %v1633 = vrot.slane %v959, 6
      %v1634 = vor.u32 %v1632, %v1633
      %v1635 = vsel %vm1530, %v1629, %v1634
      %v1636 = vrot.slane %v964, 5
      %v1637 = vrot.slane %v967, 6
      %v1638 = vor.u32 %v1636, %v1637
      %v1639 = vrot.slane %v1638, 4
      %v1640 = vrot.slane %v977, 5
      %v1641 = vrot.slane %v973, 6
      %v1642 = vor.u32 %v1640, %v1641
      %v1643 = vsel %vm1530, %v1639, %v1642
      %v1644 = vrot.slane %v1642, 4
      %v1645 = vshrl.u32 %v787, 16
      %v1647 = vrot.slane %v1645, 5
      %v1648 = vrot.slane %v983, 6
      %v1649 = vor.u32 %v1647, %v1648
      %v1650 = vsel %vm1530, %v1644, %v1649
      %s1651 = scalar_lea.vmem %s2, 48
      %v1652 = vld [vmem:[%s1651] sm:$0xf]
      %v1653 = vld [vmem:[%s1651 + $0x4] sm:$0xf]
      %v1654 = vld [vmem:[%s1651 + $0x8] sm:$0xf]
      %v1655 = vld [vmem:[%s1651 + $0xc] sm:$0xf]
      %v1656 = vunpack.c.l.b16 %v1538
      %v1657 = vunpack.c.l.b16 %v1545
      %v1658 = vunpack.c.l.b16 %v1553
      %v1659 = vunpack.c.l.b16 %v1560
      %v1660 = vunpack.c.l.b16 %v1568
      %v1661 = vunpack.c.l.b16 %v1575
      %v1662 = vunpack.c.l.b16 %v1583
      %v1663 = vunpack.c.l.b16 %v1590
      %v1664 = vunpack.c.l.b16 %v1598
      %v1665 = vunpack.c.l.b16 %v1605
      %v1666 = vunpack.c.l.b16 %v1613
      %v1667 = vunpack.c.l.b16 %v1620
      %v1668 = vunpack.c.l.b16 %v1628
      %v1669 = vunpack.c.l.b16 %v1635
      %v1670 = vunpack.c.l.b16 %v1643
      %v1671 = vunpack.c.l.b16 %v1650
      %v1672 = vpack.c.b16 %v1657, %v1656
      %v1673 = vpack.c.b16 %v1659, %v1658
      %v1674 = vpack.c.b16 %v1661, %v1660
      %v1675 = vpack.c.b16 %v1663, %v1662
      %v1676 = vpack.c.b16 %v1665, %v1664
      %v1677 = vpack.c.b16 %v1667, %v1666
      %v1678 = vpack.c.b16 %v1669, %v1668
      %v1679 = vpack.c.b16 %v1671, %v1670
      %v1684 = vunpack.c.l.b16 %v1652
      %v1685 = vunpack.c.l.b16 %v1653
      %v1686 = vunpack.c.l.b16 %v1654
      %v1687 = vunpack.c.l.b16 %v1655
      %v1688 = vpack.c.b16 %v1685, %v1684
      %v1689 = vpack.c.b16 %v1687, %v1686
      %v1693 = vsel %vm1028, %v1672, 0
      %v1696 = vsel %vm1028, %v1673, 0
      %v1699 = vsel %vm1028, %v1674, 0
      %v1702 = vsel %vm1028, %v1675, 0
      %v1705 = vsel %vm1028, %v1676, 0
      %v1708 = vsel %vm1028, %v1677, 0
      %v1711 = vsel %vm1028, %v1678, 0
      %v1714 = vsel %vm1028, %v1679, 0
      %1716 = vmatprep.subr.bf16.mxu0 0
      %1717 = vmatpush1.bf16.msra.mxu0 %v1688
      %1718 = vmatprep.subr.bf16.mxu0 0
      %1719 = vmatpush1.bf16.msra.mxu0 %v1689
      %1720 = vmatprep.subr.bf16.mxu0 0
      %1721 = vmatpush1.bf16.msra.mxu0 0
      %1722 = vmatprep.subr.bf16.mxu0 0
      %1723 = vmatpush1.bf16.msra.mxu0 0
      %1724 = vmatprep.subr.bf16.mxu0 0
      %1725 = vmatpush1.bf16.msra.mxu0 0
      %1726 = vmatprep.subr.bf16.mxu0 0
      %1727 = vmatpush1.bf16.msra.mxu0 0
      %1728 = vmatprep.subr.bf16.mxu0 0
      %1729 = vmatpush1.bf16.msra.mxu0 0
      %1730 = vmatprep.subr.bf16.mxu0 0
      %1731 = vmatpush1.bf16.msra.mxu0 0
      %1732 = vmatprep.subr.bf16.mxu0 0
      %1733 = vmatpush1.bf16.msra.mxu0 0
      %1734 = vmatprep.subr.bf16.mxu0 0
      %1735 = vmatpush1.bf16.msra.mxu0 0
      %1736 = vmatprep.subr.bf16.mxu0 0
      %1737 = vmatpush1.bf16.msra.mxu0 0
      %1738 = vmatprep.subr.bf16.mxu0 0
      %1739 = vmatpush1.bf16.msra.mxu0 0
      %1740 = vmatprep.subr.bf16.mxu0 0
      %1741 = vmatpush1.bf16.msra.mxu0 0
      %1742 = vmatprep.subr.bf16.mxu0 0
      %1743 = vmatpush1.bf16.msra.mxu0 0
      %1744 = vmatprep.subr.bf16.mxu0 0
      %1745 = vmatpush1.bf16.msra.mxu0 0
      %1746 = vmatprep.subr.bf16.mxu0 0
      %1747 = vmatpush1.bf16.msra.mxu0 0
      %1748 = vmatprep.mubr.bf16.mxu0 0
      %1749 = vmatmul.mubr.bf16.gmra.mrb[0].mxu0 %v1693
      %v1750 = vpop.f32.mrb[0].mxu0
      %v1751 = vadd.f32 0.0, %v1750
      %v1752 = vpop.f32.mrb[0].mxu0
      %v1753 = vpop.f32.mrb[0].mxu0
      %v1754 = vadd.f32 0.0, %v1753
      %v1755 = vpop.f32.mrb[0].mxu0
      %1756 = vmatprep.mubr.bf16.mxu0 0
      %1757 = vmatmul.mubr.bf16.gmra.mrb[0].mxu0 %v1696
      %v1758 = vpop.f32.mrb[0].mxu0
      %v1759 = vadd.f32 0.0, %v1758
      %v1760 = vpop.f32.mrb[0].mxu0
      %v1761 = vpop.f32.mrb[0].mxu0
      %v1762 = vadd.f32 0.0, %v1761
      %v1763 = vpop.f32.mrb[0].mxu0
      %1764 = vmatprep.mubr.bf16.mxu0 0
      %1765 = vmatmul.mubr.bf16.gmra.mrb[0].mxu0 %v1699
      %v1766 = vpop.f32.mrb[0].mxu0
      %v1767 = vadd.f32 0.0, %v1766
      %v1768 = vpop.f32.mrb[0].mxu0
      %v1769 = vpop.f32.mrb[0].mxu0
      %v1770 = vadd.f32 0.0, %v1769
      %v1771 = vpop.f32.mrb[0].mxu0
      %1772 = vmatprep.mubr.bf16.mxu0 0
      %1773 = vmatmul.mubr.bf16.gmra.mrb[0].mxu0 %v1702
      %v1774 = vpop.f32.mrb[0].mxu0
      %v1775 = vadd.f32 0.0, %v1774
      %v1776 = vpop.f32.mrb[0].mxu0
      %v1777 = vpop.f32.mrb[0].mxu0
      %v1778 = vadd.f32 0.0, %v1777
      %v1779 = vpop.f32.mrb[0].mxu0
      %1780 = vmatprep.mubr.bf16.mxu0 0
      %1781 = vmatmul.mubr.bf16.gmra.mrb[0].mxu0 %v1705
      %v1782 = vpop.f32.mrb[0].mxu0
      %v1783 = vadd.f32 0.0, %v1782
      %v1784 = vpop.f32.mrb[0].mxu0
      %v1785 = vpop.f32.mrb[0].mxu0
      %v1786 = vadd.f32 0.0, %v1785
      %v1787 = vpop.f32.mrb[0].mxu0
      %1788 = vmatprep.mubr.bf16.mxu0 0
      %1789 = vmatmul.mubr.bf16.gmra.mrb[0].mxu0 %v1708
      %v1790 = vpop.f32.mrb[0].mxu0
      %v1791 = vadd.f32 0.0, %v1790
      %v1792 = vpop.f32.mrb[0].mxu0
      %v1793 = vpop.f32.mrb[0].mxu0
      %v1794 = vadd.f32 0.0, %v1793
      %v1795 = vpop.f32.mrb[0].mxu0
      %1796 = vmatprep.mubr.bf16.mxu0 0
      %1797 = vmatmul.mubr.bf16.gmra.mrb[0].mxu0 %v1711
      %v1798 = vpop.f32.mrb[0].mxu0
      %v1799 = vadd.f32 0.0, %v1798
      %v1800 = vpop.f32.mrb[0].mxu0
      %v1801 = vpop.f32.mrb[0].mxu0
      %v1802 = vadd.f32 0.0, %v1801
      %v1803 = vpop.f32.mrb[0].mxu0
      %1804 = vmatprep.mubr.bf16.mxu0 0
      %1805 = vmatmul.mubr.bf16.gmra.mrb[0].mxu0 %v1714
      %v1806 = vpop.f32.mrb[0].mxu0
      %v1807 = vadd.f32 0.0, %v1806
      %v1808 = vpop.f32.mrb[0].mxu0
      %v1809 = vpop.f32.mrb[0].mxu0
      %v1810 = vadd.f32 0.0, %v1809
      %v1811 = vpop.f32.mrb[0].mxu0
      %1812 = vdwg.mxu0
      %v1813 = vadd.f32 %v1512, %v1751
      %v1814 = vadd.f32 %v1513, %v1754
      %v1815 = vadd.f32 %v1514, %v1759
      %v1816 = vadd.f32 %v1515, %v1762
      %v1817 = vadd.f32 %v1516, %v1767
      %v1818 = vadd.f32 %v1517, %v1770
      %v1819 = vadd.f32 %v1518, %v1775
      %v1820 = vadd.f32 %v1519, %v1778
      %v1821 = vadd.f32 %v1520, %v1783
      %v1822 = vadd.f32 %v1521, %v1786
      %v1823 = vadd.f32 %v1522, %v1791
      %v1824 = vadd.f32 %v1523, %v1794
      %v1825 = vadd.f32 %v1524, %v1799
      %v1826 = vadd.f32 %v1525, %v1802
      %v1827 = vadd.f32 %v1526, %v1807
      %v1828 = vadd.f32 %v1527, %v1810
      %vm1829 = vcmask 1041408
      %vm1830 = vcmask 1045508
      %vm1831 = vmor %vm1829, %vm1830
      %v1832 = vrot.slane %v764, 6
      %v1833 = vrot.slane %v1832, 4
      %v1834 = vrot.slane %v765, 6
      %v1835 = vsel %vm1831, %v1833, %v1834
      %v1836 = vrot.slane %v1834, 4
      %v1837 = vrot.slane %v766, 6
      %v1838 = vsel %vm1831, %v1836, %v1837
      %v1839 = vrot.slane %v767, 6
      %v1840 = vrot.slane %v1839, 4
      %v1841 = vrot.slane %v768, 6
      %v1842 = vsel %vm1831, %v1840, %v1841
      %v1843 = vrot.slane %v1841, 4
      %v1844 = vrot.slane %v769, 6
      %v1845 = vsel %vm1831, %v1843, %v1844
      %v1846 = vrot.slane %v770, 6
      %v1847 = vrot.slane %v1846, 4
      %v1848 = vrot.slane %v771, 6
      %v1849 = vsel %vm1831, %v1847, %v1848
      %v1850 = vrot.slane %v1848, 4
      %v1851 = vrot.slane %v772, 6
      %v1852 = vsel %vm1831, %v1850, %v1851
      %v1853 = vrot.slane %v773, 6
      %v1854 = vrot.slane %v1853, 4
      %v1855 = vrot.slane %v774, 6
      %v1856 = vsel %vm1831, %v1854, %v1855
      %v1857 = vrot.slane %v1855, 4
      %v1858 = vrot.slane %v775, 6
      %v1859 = vsel %vm1831, %v1857, %v1858
      %v1860 = vrot.slane %v776, 6
      %v1861 = vrot.slane %v1860, 4
      %v1862 = vrot.slane %v777, 6
      %v1863 = vsel %vm1831, %v1861, %v1862
      %v1864 = vrot.slane %v1862, 4
      %v1865 = vrot.slane %v778, 6
      %v1866 = vsel %vm1831, %v1864, %v1865
      %v1867 = vrot.slane %v779, 6
      %v1868 = vrot.slane %v1867, 4
      %v1869 = vrot.slane %v780, 6
      %v1870 = vsel %vm1831, %v1868, %v1869
      %v1871 = vrot.slane %v1869, 4
      %v1872 = vrot.slane %v781, 6
      %v1873 = vsel %vm1831, %v1871, %v1872
      %v1874 = vrot.slane %v782, 6
      %v1875 = vrot.slane %v1874, 4
      %v1876 = vrot.slane %v783, 6
      %v1877 = vsel %vm1831, %v1875, %v1876
      %v1878 = vrot.slane %v1876, 4
      %v1879 = vrot.slane %v784, 6
      %v1880 = vsel %vm1831, %v1878, %v1879
      %v1881 = vrot.slane %v785, 6
      %v1882 = vrot.slane %v1881, 4
      %v1883 = vrot.slane %v786, 6
      %v1884 = vsel %vm1831, %v1882, %v1883
      %v1885 = vrot.slane %v1883, 4
      %v1886 = vrot.slane %v787, 6
      %v1887 = vsel %vm1831, %v1885, %v1886
      %s1888 = scalar_lea.vmem %s2, 64
      %v1889 = vld [vmem:[%s1888] sm:$0xf]
      %v1890 = vld [vmem:[%s1888 + $0x4] sm:$0xf]
      %v1891 = vld [vmem:[%s1888 + $0x8] sm:$0xf]
      %v1892 = vld [vmem:[%s1888 + $0xc] sm:$0xf]
      %v1893 = vunpack.c.l.b16 %v1835
      %v1894 = vunpack.c.l.b16 %v1838
      %v1895 = vunpack.c.l.b16 %v1842
      %v1896 = vunpack.c.l.b16 %v1845
      %v1897 = vunpack.c.l.b16 %v1849
      %v1898 = vunpack.c.l.b16 %v1852
      %v1899 = vunpack.c.l.b16 %v1856
      %v1900 = vunpack.c.l.b16 %v1859
      %v1901 = vunpack.c.l.b16 %v1863
      %v1902 = vunpack.c.l.b16 %v1866
      %v1903 = vunpack.c.l.b16 %v1870
      %v1904 = vunpack.c.l.b16 %v1873
      %v1905 = vunpack.c.l.b16 %v1877
      %v1906 = vunpack.c.l.b16 %v1880
      %v1907 = vunpack.c.l.b16 %v1884
      %v1908 = vunpack.c.l.b16 %v1887
      %v1909 = vpack.c.b16 %v1894, %v1893
      %v1910 = vpack.c.b16 %v1896, %v1895
      %v1911 = vpack.c.b16 %v1898, %v1897
      %v1912 = vpack.c.b16 %v1900, %v1899
      %v1913 = vpack.c.b16 %v1902, %v1901
      %v1914 = vpack.c.b16 %v1904, %v1903
      %v1915 = vpack.c.b16 %v1906, %v1905
      %v1916 = vpack.c.b16 %v1908, %v1907
      %v1921 = vunpack.c.l.b16 %v1889
      %v1922 = vunpack.c.l.b16 %v1890
      %v1923 = vunpack.c.l.b16 %v1891
      %v1924 = vunpack.c.l.b16 %v1892
      %v1925 = vpack.c.b16 %v1922, %v1921
      %v1926 = vpack.c.b16 %v1924, %v1923
      %v1930 = vsel %vm1028, %v1909, 0
      %v1933 = vsel %vm1028, %v1910, 0
      %v1936 = vsel %vm1028, %v1911, 0
      %v1939 = vsel %vm1028, %v1912, 0
      %v1942 = vsel %vm1028, %v1913, 0
      %v1945 = vsel %vm1028, %v1914, 0
      %v1948 = vsel %vm1028, %v1915, 0
      %v1951 = vsel %vm1028, %v1916, 0
      %1953 = vmatprep.subr.bf16.mxu0 0
      %1954 = vmatpush1.bf16.msra.mxu0 %v1925
      %1955 = vmatprep.subr.bf16.mxu0 0
      %1956 = vmatpush1.bf16.msra.mxu0 %v1926
      %1957 = vmatprep.subr.bf16.mxu0 0
      %1958 = vmatpush1.bf16.msra.mxu0 0
      %1959 = vmatprep.subr.bf16.mxu0 0
      %1960 = vmatpush1.bf16.msra.mxu0 0
      %1961 = vmatprep.subr.bf16.mxu0 0
      %1962 = vmatpush1.bf16.msra.mxu0 0
      %1963 = vmatprep.subr.bf16.mxu0 0
      %1964 = vmatpush1.bf16.msra.mxu0 0
      %1965 = vmatprep.subr.bf16.mxu0 0
      %1966 = vmatpush1.bf16.msra.mxu0 0
      %1967 = vmatprep.subr.bf16.mxu0 0
      %1968 = vmatpush1.bf16.msra.mxu0 0
      %1969 = vmatprep.subr.bf16.mxu0 0
      %1970 = vmatpush1.bf16.msra.mxu0 0
      %1971 = vmatprep.subr.bf16.mxu0 0
      %1972 = vmatpush1.bf16.msra.mxu0 0
      %1973 = vmatprep.subr.bf16.mxu0 0
      %1974 = vmatpush1.bf16.msra.mxu0 0
      %1975 = vmatprep.subr.bf16.mxu0 0
      %1976 = vmatpush1.bf16.msra.mxu0 0
      %1977 = vmatprep.subr.bf16.mxu0 0
      %1978 = vmatpush1.bf16.msra.mxu0 0
      %1979 = vmatprep.subr.bf16.mxu0 0
      %1980 = vmatpush1.bf16.msra.mxu0 0
      %1981 = vmatprep.subr.bf16.mxu0 0
      %1982 = vmatpush1.bf16.msra.mxu0 0
      %1983 = vmatprep.subr.bf16.mxu0 0
      %1984 = vmatpush1.bf16.msra.mxu0 0
      %1985 = vmatprep.mubr.bf16.mxu0 0
      %1986 = vmatmul.mubr.bf16.gmra.mrb[0].mxu0 %v1930
      %v1987 = vpop.f32.mrb[0].mxu0
      %v1988 = vadd.f32 0.0, %v1987
      %v1989 = vpop.f32.mrb[0].mxu0
      %v1990 = vpop.f32.mrb[0].mxu0
      %v1991 = vadd.f32 0.0, %v1990
      %v1992 = vpop.f32.mrb[0].mxu0
      %1993 = vmatprep.mubr.bf16.mxu0 0
      %1994 = vmatmul.mubr.bf16.gmra.mrb[0].mxu0 %v1933
      %v1995 = vpop.f32.mrb[0].mxu0
      %v1996 = vadd.f32 0.0, %v1995
      %v1997 = vpop.f32.mrb[0].mxu0
      %v1998 = vpop.f32.mrb[0].mxu0
      %v1999 = vadd.f32 0.0, %v1998
      %v2000 = vpop.f32.mrb[0].mxu0
      %2001 = vmatprep.mubr.bf16.mxu0 0
      %2002 = vmatmul.mubr.bf16.gmra.mrb[0].mxu0 %v1936
      %v2003 = vpop.f32.mrb[0].mxu0
      %v2004 = vadd.f32 0.0, %v2003
      %v2005 = vpop.f32.mrb[0].mxu0
      %v2006 = vpop.f32.mrb[0].mxu0
      %v2007 = vadd.f32 0.0, %v2006
      %v2008 = vpop.f32.mrb[0].mxu0
      %2009 = vmatprep.mubr.bf16.mxu0 0
      %2010 = vmatmul.mubr.bf16.gmra.mrb[0].mxu0 %v1939
      %v2011 = vpop.f32.mrb[0].mxu0
      %v2012 = vadd.f32 0.0, %v2011
      %v2013 = vpop.f32.mrb[0].mxu0
      %v2014 = vpop.f32.mrb[0].mxu0
      %v2015 = vadd.f32 0.0, %v2014
      %v2016 = vpop.f32.mrb[0].mxu0
      %2017 = vmatprep.mubr.bf16.mxu0 0
      %2018 = vmatmul.mubr.bf16.gmra.mrb[0].mxu0 %v1942
      %v2019 = vpop.f32.mrb[0].mxu0
      %v2020 = vadd.f32 0.0, %v2019
      %v2021 = vpop.f32.mrb[0].mxu0
      %v2022 = vpop.f32.mrb[0].mxu0
      %v2023 = vadd.f32 0.0, %v2022
      %v2024 = vpop.f32.mrb[0].mxu0
      %2025 = vmatprep.mubr.bf16.mxu0 0
      %2026 = vmatmul.mubr.bf16.gmra.mrb[0].mxu0 %v1945
      %v2027 = vpop.f32.mrb[0].mxu0
      %v2028 = vadd.f32 0.0, %v2027
      %v2029 = vpop.f32.mrb[0].mxu0
      %v2030 = vpop.f32.mrb[0].mxu0
      %v2031 = vadd.f32 0.0, %v2030
      %v2032 = vpop.f32.mrb[0].mxu0
      %2033 = vmatprep.mubr.bf16.mxu0 0
      %2034 = vmatmul.mubr.bf16.gmra.mrb[0].mxu0 %v1948
      %v2035 = vpop.f32.mrb[0].mxu0
      %v2036 = vadd.f32 0.0, %v2035
      %v2037 = vpop.f32.mrb[0].mxu0
      %v2038 = vpop.f32.mrb[0].mxu0
      %v2039 = vadd.f32 0.0, %v2038
      %v2040 = vpop.f32.mrb[0].mxu0
      %2041 = vmatprep.mubr.bf16.mxu0 0
      %2042 = vmatmul.mubr.bf16.gmra.mrb[0].mxu0 %v1951
      %v2043 = vpop.f32.mrb[0].mxu0
      %v2044 = vadd.f32 0.0, %v2043
      %v2045 = vpop.f32.mrb[0].mxu0
      %v2046 = vpop.f32.mrb[0].mxu0
      %v2047 = vadd.f32 0.0, %v2046
      %v2048 = vpop.f32.mrb[0].mxu0
      %2049 = vdwg.mxu0
      %v2050 = vadd.f32 %v1813, %v1988
      %v2051 = vadd.f32 %v1814, %v1991
      %v2052 = vadd.f32 %v1815, %v1996
      %v2053 = vadd.f32 %v1816, %v1999
      %v2054 = vadd.f32 %v1817, %v2004
      %v2055 = vadd.f32 %v1818, %v2007
      %v2056 = vadd.f32 %v1819, %v2012
      %v2057 = vadd.f32 %v1820, %v2015
      %v2058 = vadd.f32 %v1821, %v2020
      %v2059 = vadd.f32 %v1822, %v2023
      %v2060 = vadd.f32 %v1823, %v2028
      %v2061 = vadd.f32 %v1824, %v2031
      %v2062 = vadd.f32 %v1825, %v2036
      %v2063 = vadd.f32 %v1826, %v2039
      %v2064 = vadd.f32 %v1827, %v2044
      %v2065 = vadd.f32 %v1828, %v2047
      %v2066 = vld [vmem:[%s3] sm:$0xff]
      %v2067 = vld [vmem:[%s3 + $0x8] sm:$0xff]
      %v2068 = vadd.f32 %v2050, %v2066
      %v2069 = vadd.f32 %v2051, %v2067
      %v2070 = vadd.f32 %v2052, %v2066
      %v2071 = vadd.f32 %v2053, %v2067
      %v2072 = vadd.f32 %v2054, %v2066
      %v2073 = vadd.f32 %v2055, %v2067
      %v2074 = vadd.f32 %v2056, %v2066
      %v2075 = vadd.f32 %v2057, %v2067
      %v2076 = vadd.f32 %v2058, %v2066
      %v2077 = vadd.f32 %v2059, %v2067
      %v2078 = vadd.f32 %v2060, %v2066
      %v2079 = vadd.f32 %v2061, %v2067
      %v2080 = vadd.f32 %v2062, %v2066
      %v2081 = vadd.f32 %v2063, %v2067
      %v2082 = vadd.f32 %v2064, %v2066
      %v2083 = vadd.f32 %v2065, %v2067
      %v2084 = vmax.f32 %v2068, 0.0
      %v2085 = vmax.f32 %v2069, 0.0
      %v2086 = vmax.f32 %v2070, 0.0
      %v2087 = vmax.f32 %v2071, 0.0
      %v2088 = vmax.f32 %v2072, 0.0
      %v2089 = vmax.f32 %v2073, 0.0
      %v2090 = vmax.f32 %v2074, 0.0
      %v2091 = vmax.f32 %v2075, 0.0
      %v2092 = vmax.f32 %v2076, 0.0
      %v2093 = vmax.f32 %v2077, 0.0
      %v2094 = vmax.f32 %v2078, 0.0
      %v2095 = vmax.f32 %v2079, 0.0
      %v2096 = vmax.f32 %v2080, 0.0
      %v2097 = vmax.f32 %v2081, 0.0
      %v2098 = vmax.f32 %v2082, 0.0
      %v2099 = vmax.f32 %v2083, 0.0
      %v2100 = vmax.f32 %v2084, %v2085
      %v2101 = vrot.slane %v2100, 4
      %v2102 = vmax.f32 %v2100, %v2101
      %v2103 = vrot.slane %v2102, 2
      %v2104 = vmax.f32 %v2102, %v2103
      %v2105 = vrot.slane %v2104, 1
      %v2106 = vmax.f32 %v2104, %v2105
      %v2107 = vmax.f32 %v2086, %v2087
      %v2108 = vrot.slane %v2107, 4
      %v2109 = vmax.f32 %v2107, %v2108
      %v2110 = vrot.slane %v2109, 2
      %v2111 = vmax.f32 %v2109, %v2110
      %v2112 = vrot.slane %v2111, 1
      %v2113 = vmax.f32 %v2111, %v2112
      %v2114 = vmax.f32 %v2088, %v2089
      %v2115 = vrot.slane %v2114, 4
      %v2116 = vmax.f32 %v2114, %v2115
      %v2117 = vrot.slane %v2116, 2
      %v2118 = vmax.f32 %v2116, %v2117
      %v2119 = vrot.slane %v2118, 1
      %v2120 = vmax.f32 %v2118, %v2119
      %v2121 = vmax.f32 %v2090, %v2091
      %v2122 = vrot.slane %v2121, 4
      %v2123 = vmax.f32 %v2121, %v2122
      %v2124 = vrot.slane %v2123, 2
      %v2125 = vmax.f32 %v2123, %v2124
      %v2126 = vrot.slane %v2125, 1
      %v2127 = vmax.f32 %v2125, %v2126
      %v2128 = vmax.f32 %v2092, %v2093
      %v2129 = vrot.slane %v2128, 4
      %v2130 = vmax.f32 %v2128, %v2129
      %v2131 = vrot.slane %v2130, 2
      %v2132 = vmax.f32 %v2130, %v2131
      %v2133 = vrot.slane %v2132, 1
      %v2134 = vmax.f32 %v2132, %v2133
      %v2135 = vmax.f32 %v2094, %v2095
      %v2136 = vrot.slane %v2135, 4
      %v2137 = vmax.f32 %v2135, %v2136
      %v2138 = vrot.slane %v2137, 2
      %v2139 = vmax.f32 %v2137, %v2138
      %v2140 = vrot.slane %v2139, 1
      %v2141 = vmax.f32 %v2139, %v2140
      %v2142 = vmax.f32 %v2096, %v2097
      %v2143 = vrot.slane %v2142, 4
      %v2144 = vmax.f32 %v2142, %v2143
      %v2145 = vrot.slane %v2144, 2
      %v2146 = vmax.f32 %v2144, %v2145
      %v2147 = vrot.slane %v2146, 1
      %v2148 = vmax.f32 %v2146, %v2147
      %v2149 = vmax.f32 %v2098, %v2099
      %v2150 = vrot.slane %v2149, 4
      %v2151 = vmax.f32 %v2149, %v2150
      %v2152 = vrot.slane %v2151, 2
      %v2153 = vmax.f32 %v2151, %v2152
      %v2154 = vrot.slane %v2153, 1
      %v2155 = vmax.f32 %v2153, %v2154
      %v2156 = vpack.c.bf16 %v2106, %v2106
      %v2157 = vpack.c.bf16 %v2113, %v2113
      %v2158 = vpack.c.bf16 %v2120, %v2120
      %v2159 = vpack.c.bf16 %v2127, %v2127
      %v2160 = vpack.c.bf16 %v2134, %v2134
      %v2161 = vpack.c.bf16 %v2141, %v2141
      %v2162 = vpack.c.bf16 %v2148, %v2148
      %v2163 = vpack.c.bf16 %v2155, %v2155
      %v2164 = vld [vmem:[%s4] sm:$0xf]
      %v2165 = vld [vmem:[%s4 + $0x4] sm:$0xf]
      %v2166 = vld [vmem:[%s4 + $0x8] sm:$0xf]
      %v2167 = vld [vmem:[%s4 + $0xc] sm:$0xf]
      %v2168 = vld [vmem:[%s4 + $0x10] sm:$0xf]
      %v2169 = vld [vmem:[%s4 + $0x14] sm:$0xf]
      %v2170 = vld [vmem:[%s4 + $0x18] sm:$0xf]
      %v2171 = vld [vmem:[%s4 + $0x1c] sm:$0xf]
      %v2172 = vld [vmem:[%s4 + $0x20] sm:$0xf]
      %v2173 = vld [vmem:[%s4 + $0x24] sm:$0xf]
      %v2174 = vld [vmem:[%s4 + $0x28] sm:$0xf]
      %v2175 = vld [vmem:[%s4 + $0x2c] sm:$0xf]
      %v2176 = vld [vmem:[%s4 + $0x30] sm:$0xf]
      %v2177 = vld [vmem:[%s4 + $0x34] sm:$0xf]
      %v2178 = vld [vmem:[%s4 + $0x38] sm:$0xf]
      %v2179 = vld [vmem:[%s4 + $0x3c] sm:$0xf]
      %v2180 = vld [vmem:[%s5] sm:$0x1]
      %v2182 = vlaneseq
      %v2183 = vshrl.u32 %v2182, 7
      %v2184 = vsub.s32 0, %v2183
      %v2185 = vrot.slane %v2180, %v2184
      %v2195 = vunpack.c.l.b16 %v2156
      %v2196 = vunpack.c.l.b16 %v2157
      %v2197 = vunpack.c.l.b16 %v2158
      %v2198 = vunpack.c.l.b16 %v2159
      %v2199 = vunpack.c.l.b16 %v2160
      %v2200 = vunpack.c.l.b16 %v2161
      %v2201 = vunpack.c.l.b16 %v2162
      %v2202 = vunpack.c.l.b16 %v2163
      %vm2203 = vcmask 1041409
      %v2204 = vsel %vm2203, %v2196, %v2195
      %vm2205 = vcmask 1042434
      %v2206 = vsel %vm2205, %v2197, %v2204
      %vm2207 = vcmask 1043459
      %v2208 = vsel %vm2207, %v2198, %v2206
      %vm2209 = vcmask 1044484
      %v2210 = vsel %vm2209, %v2199, %v2208
      %vm2211 = vcmask 1045509
      %v2212 = vsel %vm2211, %v2200, %v2210
      %vm2213 = vcmask 1046534
      %v2214 = vsel %vm2213, %v2201, %v2212
      %vm2215 = vcmask 1047559
      %v2216 = vsel %vm2215, %v2202, %v2214
      %v2217 = vpack.c.b16 %v2216, %v2216
      %v2235 = vunpack.c.l.b16 %v2164
      %v2236 = vunpack.c.l.b16 %v2165
      %v2237 = vunpack.c.l.b16 %v2166
      %v2238 = vunpack.c.l.b16 %v2167
      %v2239 = vunpack.c.l.b16 %v2168
      %v2240 = vunpack.c.l.b16 %v2169
      %v2241 = vunpack.c.l.b16 %v2170
      %v2242 = vunpack.c.l.b16 %v2171
      %v2243 = vunpack.c.l.b16 %v2172
      %v2244 = vunpack.c.l.b16 %v2173
      %v2245 = vunpack.c.l.b16 %v2174
      %v2246 = vunpack.c.l.b16 %v2175
      %v2247 = vunpack.c.l.b16 %v2176
      %v2248 = vunpack.c.l.b16 %v2177
      %v2249 = vunpack.c.l.b16 %v2178
      %v2250 = vunpack.c.l.b16 %v2179
      %v2251 = vpack.c.b16 %v2236, %v2235
      %v2252 = vpack.c.b16 %v2238, %v2237
      %v2253 = vpack.c.b16 %v2240, %v2239
      %v2254 = vpack.c.b16 %v2242, %v2241
      %v2255 = vpack.c.b16 %v2244, %v2243
      %v2256 = vpack.c.b16 %v2246, %v2245
      %v2257 = vpack.c.b16 %v2248, %v2247
      %v2258 = vpack.c.b16 %v2250, %v2249
      %2267 = vmatprep.subr.bf16.mxu0 0
      %2268 = vmatpush1.bf16.msra.mxu0 %v2251
      %2269 = vmatprep.subr.bf16.mxu0 0
      %2270 = vmatpush1.bf16.msra.mxu0 %v2252
      %2271 = vmatprep.subr.bf16.mxu0 0
      %2272 = vmatpush1.bf16.msra.mxu0 %v2253
      %2273 = vmatprep.subr.bf16.mxu0 0
      %2274 = vmatpush1.bf16.msra.mxu0 %v2254
      %2275 = vmatprep.subr.bf16.mxu0 0
      %2276 = vmatpush1.bf16.msra.mxu0 %v2255
      %2277 = vmatprep.subr.bf16.mxu0 0
      %2278 = vmatpush1.bf16.msra.mxu0 %v2256
      %2279 = vmatprep.subr.bf16.mxu0 0
      %2280 = vmatpush1.bf16.msra.mxu0 %v2257
      %2281 = vmatprep.subr.bf16.mxu0 0
      %2282 = vmatpush1.bf16.msra.mxu0 %v2258
      %2283 = vmatprep.subr.bf16.mxu0 0
      %2284 = vmatpush1.bf16.msra.mxu0 0
      %2285 = vmatprep.subr.bf16.mxu0 0
      %2286 = vmatpush1.bf16.msra.mxu0 0
      %2287 = vmatprep.subr.bf16.mxu0 0
      %2288 = vmatpush1.bf16.msra.mxu0 0
      %2289 = vmatprep.subr.bf16.mxu0 0
      %2290 = vmatpush1.bf16.msra.mxu0 0
      %2291 = vmatprep.subr.bf16.mxu0 0
      %2292 = vmatpush1.bf16.msra.mxu0 0
      %2293 = vmatprep.subr.bf16.mxu0 0
      %2294 = vmatpush1.bf16.msra.mxu0 0
      %2295 = vmatprep.subr.bf16.mxu0 0
      %2296 = vmatpush1.bf16.msra.mxu0 0
      %2297 = vmatprep.subr.bf16.mxu0 0
      %2298 = vmatpush1.bf16.msra.mxu0 0
      %2299 = vmatprep.mubr.bf16.mxu0 0
      %2300 = vmatmul.mubr.bf16.gmra.mrb[0].mxu0 %v2217
      %v2301 = vpop.f32.mrb[0].mxu0
      %v2302 = vadd.f32 %v2185, %v2301
      %v2303 = vpop.f32.mrb[0].mxu0
      %v2304 = vpop.f32.mrb[0].mxu0
      %v2305 = vpop.f32.mrb[0].mxu0
      %2306 = vdwg.mxu0
      %2307 = vst [vmem:[%s246] sm:$0xff] %v2302
      %p2308 = scmp.lt.s32.totalorder %s17, 1
      %s2309 = scalar_select %p2308, %s17, 1
      %s2310 = smul.addr %s2309, 8
      %s2311 = scalar_lea.vmem %s6, %s2310
      // Predicated region
      $region45: #{textcnn_forward.1} parent=43 // pred_check
        %p2312 = pneg %p166
      $region46: #{textcnn_forward.1} parent=43 // pred_check_branch
        %2314 = sbr.rel (%p2312) target = $region48
      $region47: #{textcnn_forward.1} parent=43 // pred_region
        _
      $region48: #{textcnn_forward.1} parent=43 // pred_fallthru
        _
    $region44: #{textcnn_forward.1} parent=5 // pred_fallthru
      _
    %p2315 = scmp.le.s32.totalorder 2, %s12
    // Predicated region
    $region49: #{textcnn_forward.1} parent=5 // pred_check
      %p2316 = pneg %p2315
    $region50: #{textcnn_forward.1} parent=5 // pred_check_branch
      %2318 = sbr.rel (%p2316) target = $region52
    $region51: #{textcnn_forward.1} parent=5 // pred_region
      %s2319 = ssub.s32 %s12, 2
      // Predicated region
      $region53: #{textcnn_forward.1} parent=51 // pred_check
        %p2320 = pneg %p172
      $region54: #{textcnn_forward.1} parent=51 // pred_check_branch
        %2322 = sbr.rel (%p2320) target = $region56
      $region55: #{textcnn_forward.1} parent=51 // pred_region
        %p2323 = scmp.lt.s32.totalorder %s18, 1
        %s2324 = scalar_select %p2323, %s18, 1
        %s2325 = smul.addr %s2324, 8
        %s2326 = scalar_lea.vmem %s6, %s2325
      $region56: #{textcnn_forward.1} parent=51 // pred_fallthru
        _
    $region52: #{textcnn_forward.1} parent=5 // pred_fallthru
      _
  $region6: #{textcnn_forward.1} parent=0 // loop_footer
    %s16 = sadd.s32 1, %s12
  $region7: #{textcnn_forward.1} parent=0 // loop_footer_branch
    %11 = sbr.rel target = $region3
  $region8: #{textcnn_forward.1} parent=0 // loop_exit
    _

</llo_original>
